<compile_context>
chip_gen: v6e
topology: v6e:2x2x1
jax: 0.10.0
libtpu: 0.0.40
codegen_flags: <defaults>
</compile_context>

<pallas_src>
import functools

import jax
import jax.numpy as jnp
from jax.experimental import pallas as pl
from jax.experimental.pallas import tpu as pltpu

EPS = 1e-5


def _conv_tile(x_ref, lh_ref, rh_ref, w_ref, xw_ref, *, K, TL, H):
    """'same'-cropped ConvTranspose1d output tile, f32, shape (Cout, TL).

    x_ref : (1, Cin, TL)    current L-tile of x (lane-dense)
    lh_ref: (1, 1, Cin, H)  H columns just left of the tile (zeros at array start)
    rh_ref: (1, 1, Cin, H)  H columns just right of the tile (zeros at array end)
    w_ref : (K, Cout, Cin)  w[k, co, ci] = weight[ci, co, k]
    xw_ref: (Cin, TL + 2H)  VMEM window scratch: xw[:, j] = x[:, base - H + j]
    """
    xw_ref[:, 0:H] = lh_ref[0, 0]
    xw_ref[:, H:H + TL] = x_ref[0]
    xw_ref[:, H + TL:H + TL + H] = rh_ref[0, 0]

    # y[co, u] = sum_{k, ci} weight[ci, co, k] * x[ci, u + (K-1)//2 - k]   (zero-padded)
    acc = None
    for k in range(K):                                   # K is tiny & static
        off = H + (K - 1) // 2 - k                       # window column of x[u + d_k]
        p = jnp.dot(w_ref[k], xw_ref[:, off:off + TL],
                    preferred_element_type=jnp.float32)  # (Cout, TL) f32
        acc = p if acc is None else acc + p
    return acc


def _stats_kernel(x_ref, lh_ref, rh_ref, w_ref, psum_ref, psumsq_ref, xw_ref,
                  *, K, TL, H):
    # Pass 1: conv tile is recomputed later; only BN partial stats leave the chip.
    acc = _conv_tile(x_ref, lh_ref, rh_ref, w_ref, xw_ref, K=K, TL=TL, H=H)
    psum_ref[0, 0] = jnp.sum(acc, axis=1, keepdims=True)          # (Cout, 1) f32
    psumsq_ref[0, 0] = jnp.sum(acc * acc, axis=1, keepdims=True)  # (Cout, 1) f32


def _conv_norm_relu_kernel(x_ref, lh_ref, rh_ref, w_ref, scale_ref, shift_ref,
                           out_ref, xw_ref, *, K, TL, H):
    # Pass 2: recompute the (cheap, MXU) conv tile, apply BN affine + ReLU, store once.
    acc = _conv_tile(x_ref, lh_ref, rh_ref, w_ref, xw_ref, K=K, TL=TL, H=H)
    out_ref[0] = jnp.maximum(acc * scale_ref[...] + shift_ref[...],
                             0.0).astype(out_ref.dtype)


def _pick_tile_l(L):
    if L % 128 == 0:
        for cand in (2048, 1024, 512, 256, 128):
            if L % cand == 0:
                return cand
    return L


@jax.jit
def trans_conv1d_act_norm(x_ncl, weight, gamma, beta):
    """x_ncl: (N, Cin, L) PyTorch NCL. weight: (Cin, Cout, K) as nn.ConvTranspose1d."""
    N, Cin, L = x_ncl.shape
    Cin_w, Cout, K = weight.shape
    assert Cin == Cin_w
    dt = x_ncl.dtype

    TL = _pick_tile_l(L)
    num_lt = L // TL
    H = max(K - 1, 1)                        # symmetric halo width (columns per side)
    assert TL >= H, "tile must be at least as wide as the kernel halo"

    # w as (K, Cout, Cin): w[k, co, ci] = weight[ci, co, k]
    wk = jnp.transpose(weight, (2, 1, 0)).astype(dt)

    # Tiny halo arrays: H columns to the left/right of every L-tile (zeros at array ends).
    x4 = x_ncl.reshape(N, Cin, num_lt, TL)
    zh = jnp.zeros((N, Cin, 1, H), dt)
    lh = jnp.concatenate([zh, x4[:, :, :-1, TL - H:]], axis=2)    # (N, Cin, num_lt, H)
    rh = jnp.concatenate([x4[:, :, 1:, :H], zh], axis=2)
    lh = jnp.transpose(lh, (0, 2, 1, 3))                          # (N, num_lt, Cin, H)
    rh = jnp.transpose(rh, (0, 2, 1, 3))

    x_spec = pl.BlockSpec((1, Cin, TL), lambda n, t: (n, 0, t))
    lh_spec = pl.BlockSpec((1, 1, Cin, H), lambda n, t: (n, t, 0, 0))
    rh_spec = pl.BlockSpec((1, 1, Cin, H), lambda n, t: (n, t, 0, 0))
    w_spec = pl.BlockSpec((K, Cout, Cin), lambda n, t: (0, 0, 0))
    par_all = pltpu.CompilerParams(dimension_semantics=("parallel", "parallel"))

    stats_kernel = functools.partial(_stats_kernel, K=K, TL=TL, H=H)
    norm_kernel = functools.partial(_conv_norm_relu_kernel, K=K, TL=TL, H=H)

    # ---- pass 1: stats-only (per-tile blocks keep both grid axes parallel) ----
    psum, psumsq = pl.pallas_call(
        stats_kernel,
        out_shape=(jax.ShapeDtypeStruct((N, num_lt, Cout, 1), jnp.float32),
                   jax.ShapeDtypeStruct((N, num_lt, Cout, 1), jnp.float32)),
        grid=(N, num_lt),
        in_specs=[x_spec, lh_spec, rh_spec, w_spec],
        out_specs=(pl.BlockSpec((1, 1, Cout, 1), lambda n, t: (n, t, 0, 0)),
                   pl.BlockSpec((1, 1, Cout, 1), lambda n, t: (n, t, 0, 0))),
        scratch_shapes=[pltpu.VMEM((Cin, TL + 2 * H), dt)],
        compiler_params=par_all,
    )(x_ncl, lh, rh, wk)

    # ---- tiny epilogue: fold partial stats -> per-channel affine (biased variance) ----
    cnt = N * L
    mean = jnp.sum(psum[..., 0], axis=(0, 1)) / cnt                     # (Cout,)
    var = jnp.sum(psumsq[..., 0], axis=(0, 1)) / cnt - mean * mean      # biased
    scale = gamma.astype(jnp.float32) * jax.lax.rsqrt(var + EPS)
    shift = beta.astype(jnp.float32) - mean * scale

    # ---- pass 2: recompute conv tile, scale/shift + ReLU, lane-dense store ----
    out = pl.pallas_call(
        norm_kernel,
        out_shape=jax.ShapeDtypeStruct((N, Cout, L), dt),
        grid=(N, num_lt),
        in_specs=[x_spec, lh_spec, rh_spec, w_spec,
                  pl.BlockSpec((Cout, 1), lambda n, t: (0, 0)),
                  pl.BlockSpec((Cout, 1), lambda n, t: (0, 0))],
        out_specs=pl.BlockSpec((1, Cout, TL), lambda n, t: (n, 0, t)),
        scratch_shapes=[pltpu.VMEM((Cin, TL + 2 * H), dt)],
        compiler_params=par_all,
    )(x_ncl, lh, rh, wk, scale.reshape(Cout, 1), shift.reshape(Cout, 1))

    return out


def _reference(x, weight, gamma, beta, eps=EPS):
    """Pure-JAX mirror of the PyTorch forward (for verification)."""
    N, Cin, L = x.shape
    _, Cout, K = weight.shape
    full = jnp.zeros((N, Cout, L + K - 1), jnp.float32)
    for i in range(L):
        for k in range(K):
            full = full.at[:, :, i + k].add(
                jnp.einsum("nc,cd->nd", x[:, :, i], weight[:, :, k]))
    new_len = L + K - 1
    pad_w = abs(L * 1 - new_len)
    y = full[:, :, pad_w // 2: new_len - (pad_w - pad_w // 2)]
    mean = y.mean(axis=(0, 2), keepdims=True)
    var = ((y - mean) ** 2).mean(axis=(0, 2), keepdims=True)
    y = (y - mean) / jnp.sqrt(var + eps) * gamma[None, :, None] + beta[None, :, None]
    return jnp.maximum(y, 0.0)


if __name__ == "__main__":
    N, Cin, Cout, L, K = 2, 4, 8, 16, 3

    key = jax.random.PRNGKey(0)
    kx, kw, kg, kb = jax.random.split(key, 4)
    x = jax.random.normal(kx, (N, Cin, L), dtype=jnp.float32)
    # nn.ConvTranspose1d weight shape: (in_channels, out_channels, kernel_size)
    weight = jax.random.normal(kw, (Cin, Cout, K), dtype=jnp.float32) * 0.1
    gamma = 1.0 + 0.1 * jax.random.normal(kg, (Cout,), dtype=jnp.float32)
    beta = 0.1 * jax.random.normal(kb, (Cout,), dtype=jnp.float32)

    out = trans_conv1d_act_norm(x, weight, gamma, beta)
    out = jax.block_until_ready(out)

    ref = _reference(x, weight, gamma, beta)
    assert out.shape == (N, Cout, L), out.shape
    assert jnp.allclose(out, ref, atol=1e-4, rtol=1e-4), float(jnp.max(jnp.abs(out - ref)))

    print("KERNEL_OK")
</pallas_src>

<mosaic_0001>
module attributes {stable_mosaic.version = 11 : i64} {
  func.func @_stats_kernel(%arg0: i32, %arg1: i32, %arg2: memref<1x4x16xf32, #tpu.memory_space<vmem>>, %arg3: memref<1x1x4x2xf32, #tpu.memory_space<vmem>>, %arg4: memref<1x1x4x2xf32, #tpu.memory_space<vmem>>, %arg5: memref<3x8x4xf32, #tpu.memory_space<vmem>>, %arg6: memref<1x1x8x1xf32, #tpu.memory_space<vmem>>, %arg7: memref<1x1x8x1xf32, #tpu.memory_space<vmem>>, %arg8: memref<4x20xf32, #tpu.memory_space<vmem>>) attributes {dimension_semantics = [#tpu.dimension_semantics<parallel>, #tpu.dimension_semantics<parallel>], iteration_bounds = array<i64: 2, 1>, scalar_prefetch = 0 : i64, scratch_operands = 1 : i64, tpu.core_type = #tpu.core_type<tc>, window_params = [{transform_indices = @transform_0, window_bounds = array<i64: 1, 4, 16>}, {transform_indices = @transform_1, window_bounds = array<i64: 1, 1, 4, 2>}, {transform_indices = @transform_2, window_bounds = array<i64: 1, 1, 4, 2>}, {pipeline_mode = #tpu.pipeline_mode<synchronous>, transform_indices = @transform_3, window_bounds = array<i64: 3, 8, 4>}, {transform_indices = @transform_4, window_bounds = array<i64: 1, 1, 8, 1>}, {transform_indices = @transform_5, window_bounds = array<i64: 1, 1, 8, 1>}]} {
    %c0 = arith.constant 0 : index
    %c0_0 = arith.constant 0 : index
    %c0_1 = arith.constant 0 : index
    %c0_2 = arith.constant 0 : index
    %0 = vector.load %arg3[%c0, %c0_0, %c0_1, %c0_2] : memref<1x1x4x2xf32, #tpu.memory_space<vmem>>, vector<1x1x4x2xf32>
    %1 = vector.shape_cast %0 : vector<1x1x4x2xf32> to vector<4x2xf32>
    %c0_3 = arith.constant 0 : index
    %c0_4 = arith.constant 0 : index
    %2 = vector.load %arg8[%c0_3, %c0_4] : memref<4x20xf32, #tpu.memory_space<vmem>>, vector<4x2xf32>
    tpu.vector_store %arg8[%c0_3, %c0_4], %1 {strides = array<i32>} : memref<4x20xf32, #tpu.memory_space<vmem>>, vector<4x2xf32>,
    %c0_5 = arith.constant 0 : index
    %c0_6 = arith.constant 0 : index
    %c0_7 = arith.constant 0 : index
    %3 = vector.load %arg2[%c0_5, %c0_6, %c0_7] : memref<1x4x16xf32, #tpu.memory_space<vmem>>, vector<1x4x16xf32>
    %4 = vector.shape_cast %3 : vector<1x4x16xf32> to vector<4x16xf32>
    %c0_8 = arith.constant 0 : index
    %c2 = arith.constant 2 : index
    %5 = vector.load %arg8[%c0_8, %c2] : memref<4x20xf32, #tpu.memory_space<vmem>>, vector<4x16xf32>
    tpu.vector_store %arg8[%c0_8, %c2], %4 {strides = array<i32>} : memref<4x20xf32, #tpu.memory_space<vmem>>, vector<4x16xf32>,
    %c0_9 = arith.constant 0 : index
    %c0_10 = arith.constant 0 : index
    %c0_11 = arith.constant 0 : index
    %c0_12 = arith.constant 0 : index
    %6 = vector.load %arg4[%c0_9, %c0_10, %c0_11, %c0_12] : memref<1x1x4x2xf32, #tpu.memory_space<vmem>>, vector<1x1x4x2xf32>
    %7 = vector.shape_cast %6 : vector<1x1x4x2xf32> to vector<4x2xf32>
    %c0_13 = arith.constant 0 : index
    %c18 = arith.constant 18 : index
    %8 = vector.load %arg8[%c0_13, %c18] : memref<4x20xf32, #tpu.memory_space<vmem>>, vector<4x2xf32>
    tpu.vector_store %arg8[%c0_13, %c18], %7 {strides = array<i32>} : memref<4x20xf32, #tpu.memory_space<vmem>>, vector<4x2xf32>,
    %c0_14 = arith.constant 0 : index
    %c0_15 = arith.constant 0 : index
    %c0_16 = arith.constant 0 : index
    %9 = vector.load %arg5[%c0_14, %c0_15, %c0_16] : memref<3x8x4xf32, #tpu.memory_space<vmem>>, vector<1x8x4xf32>
    %10 = vector.shape_cast %9 : vector<1x8x4xf32> to vector<8x4xf32>
    %c0_17 = arith.constant 0 : index
    %c3 = arith.constant 3 : index
    %11 = vector.load %arg8[%c0_17, %c3] : memref<4x20xf32, #tpu.memory_space<vmem>>, vector<4x16xf32>
    %cst = arith.constant dense<0.000000e+00> : vector<8x16xf32>
    %12 = tpu.matmul %10, %11, %cst {dimension_numbers = #tpu.dot_dimension_numbers<[1], [0], [0], [1], [0, 0, 1, 1], [], []>} : vector<8x4xf32>, vector<4x16xf32>, vector<8x16xf32> -> vector<8x16xf32>
    %c1 = arith.constant 1 : index
    %c0_18 = arith.constant 0 : index
    %c0_19 = arith.constant 0 : index
    %13 = vector.load %arg5[%c1, %c0_18, %c0_19] : memref<3x8x4xf32, #tpu.memory_space<vmem>>, vector<1x8x4xf32>
    %14 = vector.shape_cast %13 : vector<1x8x4xf32> to vector<8x4xf32>
    %c0_20 = arith.constant 0 : index
    %c2_21 = arith.constant 2 : index
    %15 = vector.load %arg8[%c0_20, %c2_21] : memref<4x20xf32, #tpu.memory_space<vmem>>, vector<4x16xf32>
    %cst_22 = arith.constant dense<0.000000e+00> : vector<8x16xf32>
    %16 = tpu.matmul %14, %15, %cst_22 {dimension_numbers = #tpu.dot_dimension_numbers<[1], [0], [0], [1], [0, 0, 1, 1], [], []>} : vector<8x4xf32>, vector<4x16xf32>, vector<8x16xf32> -> vector<8x16xf32>
    %17 = arith.addf %12, %16 : vector<8x16xf32>
    %c2_23 = arith.constant 2 : index
    %c0_24 = arith.constant 0 : index
    %c0_25 = arith.constant 0 : index
    %18 = vector.load %arg5[%c2_23, %c0_24, %c0_25] : memref<3x8x4xf32, #tpu.memory_space<vmem>>, vector<1x8x4xf32>
    %19 = vector.shape_cast %18 : vector<1x8x4xf32> to vector<8x4xf32>
    %c0_26 = arith.constant 0 : index
    %c1_27 = arith.constant 1 : index
    %20 = vector.load %arg8[%c0_26, %c1_27] : memref<4x20xf32, #tpu.memory_space<vmem>>, vector<4x16xf32>
    %cst_28 = arith.constant dense<0.000000e+00> : vector<8x16xf32>
    %21 = tpu.matmul %19, %20, %cst_28 {dimension_numbers = #tpu.dot_dimension_numbers<[1], [0], [0], [1], [0, 0, 1, 1], [], []>} : vector<8x4xf32>, vector<4x16xf32>, vector<8x16xf32> -> vector<8x16xf32>
    %22 = arith.addf %17, %21 : vector<8x16xf32>
    %cst_29 = arith.constant dense<0.000000e+00> : vector<8xf32>
    %23 = vector.multi_reduction <add>, %22, %cst_29 [1] : vector<8x16xf32> to vector<8xf32>
    %24 = vector.shape_cast %23 : vector<8xf32> to vector<8x1xf32>
    %c0_30 = arith.constant 0 : index
    %c0_31 = arith.constant 0 : index
    %c0_32 = arith.constant 0 : index
    %c0_33 = arith.constant 0 : index
    %25 = vector.load %arg6[%c0_30, %c0_31, %c0_32, %c0_33] : memref<1x1x8x1xf32, #tpu.memory_space<vmem>>, vector<1x1x8x1xf32>
    %26 = vector.shape_cast %25 : vector<1x1x8x1xf32> to vector<8x1xf32>
    %27 = vector.shape_cast %24 : vector<8x1xf32> to vector<1x1x8x1xf32>
    tpu.vector_store %arg6[%c0_30, %c0_31, %c0_32, %c0_33], %27 {strides = array<i32>} : memref<1x1x8x1xf32, #tpu.memory_space<vmem>>, vector<1x1x8x1xf32>,
    %28 = arith.mulf %22, %22 : vector<8x16xf32>
    %cst_34 = arith.constant dense<0.000000e+00> : vector<8xf32>
    %29 = vector.multi_reduction <add>, %28, %cst_34 [1] : vector<8x16xf32> to vector<8xf32>
    %30 = vector.shape_cast %29 : vector<8xf32> to vector<8x1xf32>
    %c0_35 = arith.constant 0 : index
    %c0_36 = arith.constant 0 : index
    %c0_37 = arith.constant 0 : index
    %c0_38 = arith.constant 0 : index
    %31 = vector.load %arg7[%c0_35, %c0_36, %c0_37, %c0_38] : memref<1x1x8x1xf32, #tpu.memory_space<vmem>>, vector<1x1x8x1xf32>
    %32 = vector.shape_cast %31 : vector<1x1x8x1xf32> to vector<8x1xf32>
    %33 = vector.shape_cast %30 : vector<8x1xf32> to vector<1x1x8x1xf32>
    tpu.vector_store %arg7[%c0_35, %c0_36, %c0_37, %c0_38], %33 {strides = array<i32>} : memref<1x1x8x1xf32, #tpu.memory_space<vmem>>, vector<1x1x8x1xf32>,
    return
  }
  func.func @transform_0(%arg0: i32, %arg1: i32) -> (i32, i32, i32) {
    %c0_i32 = arith.constant 0 : i32
    %c0_i32_0 = arith.constant 0 : i32
    return %arg0, %c0_i32, %arg1 : i32, i32, i32
  }
  func.func @transform_1(%arg0: i32, %arg1: i32) -> (i32, i32, i32, i32) {
    %c0_i32 = arith.constant 0 : i32
    %c0_i32_0 = arith.constant 0 : i32
    %c0_i32_1 = arith.constant 0 : i32
    return %arg0, %arg1, %c0_i32, %c0_i32_0 : i32, i32, i32, i32
  }
  func.func @transform_2(%arg0: i32, %arg1: i32) -> (i32, i32, i32, i32) {
    %c0_i32 = arith.constant 0 : i32
    %c0_i32_0 = arith.constant 0 : i32
    %c0_i32_1 = arith.constant 0 : i32
    return %arg0, %arg1, %c0_i32, %c0_i32_0 : i32, i32, i32, i32
  }
  func.func @transform_3(%arg0: i32, %arg1: i32) -> (i32, i32, i32) {
    %c0_i32 = arith.constant 0 : i32
    %c0_i32_0 = arith.constant 0 : i32
    %c0_i32_1 = arith.constant 0 : i32
    %c0_i32_2 = arith.constant 0 : i32
    return %c0_i32, %c0_i32_0, %c0_i32_1 : i32, i32, i32
  }
  func.func @transform_4(%arg0: i32, %arg1: i32) -> (i32, i32, i32, i32) {
    %c0_i32 = arith.constant 0 : i32
    %c0_i32_0 = arith.constant 0 : i32
    %c0_i32_1 = arith.constant 0 : i32
    return %arg0, %arg1, %c0_i32, %c0_i32_0 : i32, i32, i32, i32
  }
  func.func @transform_5(%arg0: i32, %arg1: i32) -> (i32, i32, i32, i32) {
    %c0_i32 = arith.constant 0 : i32
    %c0_i32_0 = arith.constant 0 : i32
    %c0_i32_1 = arith.constant 0 : i32
    return %arg0, %arg1, %c0_i32, %c0_i32_0 : i32, i32, i32, i32
  }
}

module attributes {stable_mosaic.version = 11 : i64} {
  func.func @_conv_norm_relu_kernel(%arg0: i32, %arg1: i32, %arg2: memref<1x4x16xf32, #tpu.memory_space<vmem>>, %arg3: memref<1x1x4x2xf32, #tpu.memory_space<vmem>>, %arg4: memref<1x1x4x2xf32, #tpu.memory_space<vmem>>, %arg5: memref<3x8x4xf32, #tpu.memory_space<vmem>>, %arg6: memref<8x1xf32, #tpu.memory_space<vmem>>, %arg7: memref<8x1xf32, #tpu.memory_space<vmem>>, %arg8: memref<1x8x16xf32, #tpu.memory_space<vmem>>, %arg9: memref<4x20xf32, #tpu.memory_space<vmem>>) attributes {dimension_semantics = [#tpu.dimension_semantics<parallel>, #tpu.dimension_semantics<parallel>], iteration_bounds = array<i64: 2, 1>, scalar_prefetch = 0 : i64, scratch_operands = 1 : i64, tpu.core_type = #tpu.core_type<tc>, window_params = [{transform_indices = @transform_0, window_bounds = array<i64: 1, 4, 16>}, {transform_indices = @transform_1, window_bounds = array<i64: 1, 1, 4, 2>}, {transform_indices = @transform_2, window_bounds = array<i64: 1, 1, 4, 2>}, {pipeline_mode = #tpu.pipeline_mode<synchronous>, transform_indices = @transform_3, window_bounds = array<i64: 3, 8, 4>}, {pipeline_mode = #tpu.pipeline_mode<synchronous>, transform_indices = @transform_4, window_bounds = array<i64: 8, 1>}, {pipeline_mode = #tpu.pipeline_mode<synchronous>, transform_indices = @transform_5, window_bounds = array<i64: 8, 1>}, {transform_indices = @transform_6, window_bounds = array<i64: 1, 8, 16>}]} {
    %c0 = arith.constant 0 : index
    %c0_0 = arith.constant 0 : index
    %c0_1 = arith.constant 0 : index
    %c0_2 = arith.constant 0 : index
    %0 = vector.load %arg3[%c0, %c0_0, %c0_1, %c0_2] : memref<1x1x4x2xf32, #tpu.memory_space<vmem>>, vector<1x1x4x2xf32>
    %1 = vector.shape_cast %0 : vector<1x1x4x2xf32> to vector<4x2xf32>
    %c0_3 = arith.constant 0 : index
    %c0_4 = arith.constant 0 : index
    %2 = vector.load %arg9[%c0_3, %c0_4] : memref<4x20xf32, #tpu.memory_space<vmem>>, vector<4x2xf32>
    tpu.vector_store %arg9[%c0_3, %c0_4], %1 {strides = array<i32>} : memref<4x20xf32, #tpu.memory_space<vmem>>, vector<4x2xf32>,
    %c0_5 = arith.constant 0 : index
    %c0_6 = arith.constant 0 : index
    %c0_7 = arith.constant 0 : index
    %3 = vector.load %arg2[%c0_5, %c0_6, %c0_7] : memref<1x4x16xf32, #tpu.memory_space<vmem>>, vector<1x4x16xf32>
    %4 = vector.shape_cast %3 : vector<1x4x16xf32> to vector<4x16xf32>
    %c0_8 = arith.constant 0 : index
    %c2 = arith.constant 2 : index
    %5 = vector.load %arg9[%c0_8, %c2] : memref<4x20xf32, #tpu.memory_space<vmem>>, vector<4x16xf32>
    tpu.vector_store %arg9[%c0_8, %c2], %4 {strides = array<i32>} : memref<4x20xf32, #tpu.memory_space<vmem>>, vector<4x16xf32>,
    %c0_9 = arith.constant 0 : index
    %c0_10 = arith.constant 0 : index
    %c0_11 = arith.constant 0 : index
    %c0_12 = arith.constant 0 : index
    %6 = vector.load %arg4[%c0_9, %c0_10, %c0_11, %c0_12] : memref<1x1x4x2xf32, #tpu.memory_space<vmem>>, vector<1x1x4x2xf32>
    %7 = vector.shape_cast %6 : vector<1x1x4x2xf32> to vector<4x2xf32>
    %c0_13 = arith.constant 0 : index
    %c18 = arith.constant 18 : index
    %8 = vector.load %arg9[%c0_13, %c18] : memref<4x20xf32, #tpu.memory_space<vmem>>, vector<4x2xf32>
    tpu.vector_store %arg9[%c0_13, %c18], %7 {strides = array<i32>} : memref<4x20xf32, #tpu.memory_space<vmem>>, vector<4x2xf32>,
    %c0_14 = arith.constant 0 : index
    %c0_15 = arith.constant 0 : index
    %c0_16 = arith.constant 0 : index
    %9 = vector.load %arg5[%c0_14, %c0_15, %c0_16] : memref<3x8x4xf32, #tpu.memory_space<vmem>>, vector<1x8x4xf32>
    %10 = vector.shape_cast %9 : vector<1x8x4xf32> to vector<8x4xf32>
    %c0_17 = arith.constant 0 : index
    %c3 = arith.constant 3 : index
    %11 = vector.load %arg9[%c0_17, %c3] : memref<4x20xf32, #tpu.memory_space<vmem>>, vector<4x16xf32>
    %cst = arith.constant dense<0.000000e+00> : vector<8x16xf32>
    %12 = tpu.matmul %10, %11, %cst {dimension_numbers = #tpu.dot_dimension_numbers<[1], [0], [0], [1], [0, 0, 1, 1], [], []>} : vector<8x4xf32>, vector<4x16xf32>, vector<8x16xf32> -> vector<8x16xf32>
    %c1 = arith.constant 1 : index
    %c0_18 = arith.constant 0 : index
    %c0_19 = arith.constant 0 : index
    %13 = vector.load %arg5[%c1, %c0_18, %c0_19] : memref<3x8x4xf32, #tpu.memory_space<vmem>>, vector<1x8x4xf32>
    %14 = vector.shape_cast %13 : vector<1x8x4xf32> to vector<8x4xf32>
    %c0_20 = arith.constant 0 : index
    %c2_21 = arith.constant 2 : index
    %15 = vector.load %arg9[%c0_20, %c2_21] : memref<4x20xf32, #tpu.memory_space<vmem>>, vector<4x16xf32>
    %cst_22 = arith.constant dense<0.000000e+00> : vector<8x16xf32>
    %16 = tpu.matmul %14, %15, %cst_22 {dimension_numbers = #tpu.dot_dimension_numbers<[1], [0], [0], [1], [0, 0, 1, 1], [], []>} : vector<8x4xf32>, vector<4x16xf32>, vector<8x16xf32> -> vector<8x16xf32>
    %17 = arith.addf %12, %16 : vector<8x16xf32>
    %c2_23 = arith.constant 2 : index
    %c0_24 = arith.constant 0 : index
    %c0_25 = arith.constant 0 : index
    %18 = vector.load %arg5[%c2_23, %c0_24, %c0_25] : memref<3x8x4xf32, #tpu.memory_space<vmem>>, vector<1x8x4xf32>
    %19 = vector.shape_cast %18 : vector<1x8x4xf32> to vector<8x4xf32>
    %c0_26 = arith.constant 0 : index
    %c1_27 = arith.constant 1 : index
    %20 = vector.load %arg9[%c0_26, %c1_27] : memref<4x20xf32, #tpu.memory_space<vmem>>, vector<4x16xf32>
    %cst_28 = arith.constant dense<0.000000e+00> : vector<8x16xf32>
    %21 = tpu.matmul %19, %20, %cst_28 {dimension_numbers = #tpu.dot_dimension_numbers<[1], [0], [0], [1], [0, 0, 1, 1], [], []>} : vector<8x4xf32>, vector<4x16xf32>, vector<8x16xf32> -> vector<8x16xf32>
    %22 = arith.addf %17, %21 : vector<8x16xf32>
    %c0_29 = arith.constant 0 : index
    %c0_30 = arith.constant 0 : index
    %23 = vector.load %arg6[%c0_29, %c0_30] : memref<8x1xf32, #tpu.memory_space<vmem>>, vector<8x1xf32>
    %24 = vector.broadcast %23 : vector<8x1xf32> to vector<8x16xf32>
    %25 = arith.mulf %22, %24 : vector<8x16xf32>
    %c0_31 = arith.constant 0 : index
    %c0_32 = arith.constant 0 : index
    %26 = vector.load %arg7[%c0_31, %c0_32] : memref<8x1xf32, #tpu.memory_space<vmem>>, vector<8x1xf32>
    %27 = vector.broadcast %26 : vector<8x1xf32> to vector<8x16xf32>
    %28 = arith.addf %25, %27 : vector<8x16xf32>
    %cst_33 = arith.constant 0.000000e+00 : f32
    %29 = vector.broadcast %cst_33 : f32 to vector<8x16xf32>
    %30 = arith.maximumf %28, %29 : vector<8x16xf32>
    %c0_34 = arith.constant 0 : index
    %c0_35 = arith.constant 0 : index
    %c0_36 = arith.constant 0 : index
    %31 = vector.load %arg8[%c0_34, %c0_35, %c0_36] : memref<1x8x16xf32, #tpu.memory_space<vmem>>, vector<1x8x16xf32>
    %32 = vector.shape_cast %31 : vector<1x8x16xf32> to vector<8x16xf32>
    %33 = vector.shape_cast %30 : vector<8x16xf32> to vector<1x8x16xf32>
    tpu.vector_store %arg8[%c0_34, %c0_35, %c0_36], %33 {strides = array<i32>} : memref<1x8x16xf32, #tpu.memory_space<vmem>>, vector<1x8x16xf32>,
    return
  }
  func.func @transform_0(%arg0: i32, %arg1: i32) -> (i32, i32, i32) {
    %c0_i32 = arith.constant 0 : i32
    %c0_i32_0 = arith.constant 0 : i32
    return %arg0, %c0_i32, %arg1 : i32, i32, i32
  }
  func.func @transform_1(%arg0: i32, %arg1: i32) -> (i32, i32, i32, i32) {
    %c0_i32 = arith.constant 0 : i32
    %c0_i32_0 = arith.constant 0 : i32
    %c0_i32_1 = arith.constant 0 : i32
    return %arg0, %arg1, %c0_i32, %c0_i32_0 : i32, i32, i32, i32
  }
  func.func @transform_2(%arg0: i32, %arg1: i32) -> (i32, i32, i32, i32) {
    %c0_i32 = arith.constant 0 : i32
    %c0_i32_0 = arith.constant 0 : i32
    %c0_i32_1 = arith.constant 0 : i32
    return %arg0, %arg1, %c0_i32, %c0_i32_0 : i32, i32, i32, i32
  }
  func.func @transform_3(%arg0: i32, %arg1: i32) -> (i32, i32, i32) {
    %c0_i32 = arith.constant 0 : i32
    %c0_i32_0 = arith.constant 0 : i32
    %c0_i32_1 = arith.constant 0 : i32
    %c0_i32_2 = arith.constant 0 : i32
    return %c0_i32, %c0_i32_0, %c0_i32_1 : i32, i32, i32
  }
  func.func @transform_4(%arg0: i32, %arg1: i32) -> (i32, i32) {
    %c0_i32 = arith.constant 0 : i32
    %c0_i32_0 = arith.constant 0 : i32
    %c0_i32_1 = arith.constant 0 : i32
    return %c0_i32, %c0_i32_0 : i32, i32
  }
  func.func @transform_5(%arg0: i32, %arg1: i32) -> (i32, i32) {
    %c0_i32 = arith.constant 0 : i32
    %c0_i32_0 = arith.constant 0 : i32
    %c0_i32_1 = arith.constant 0 : i32
    return %c0_i32, %c0_i32_0 : i32, i32
  }
  func.func @transform_6(%arg0: i32, %arg1: i32) -> (i32, i32, i32) {
    %c0_i32 = arith.constant 0 : i32
    %c0_i32_0 = arith.constant 0 : i32
    return %arg0, %c0_i32, %arg1 : i32, i32, i32
  }
}

</mosaic_0001>

<llo_original>
// kernel: trans_conv1d_act_norm.3
$region0: #{trans_conv1d_act_norm.3}
  #allocation0 [shape = 'u32[]', space=smem, size = 0x4, offset = 0x4, fixed_abs, tag = 'smem constant byte address 0x4 - core index']
  #allocation1 [shape = 'u32[144,128]{1,0:T(1,128)}', space=vmem, size = 0x12000, scoped, tag = 'internal scratch']
  #allocation2 [shape = 'f32[4,20]{1,0:T(4,128)}', space=vmem, size = 0x800, scoped, tag = 'scratch operand']
  %s0 = inlined_call_operand.vmem [shape: f32[2,4,16], index: 0, kind: input, shape index: {}]
  %s1 = inlined_call_operand.vmem [shape: f32[2,1,4,2], index: 1, kind: input, shape index: {}, may-alias: {1,2}]
  %s2 = inlined_call_operand.vmem [shape: f32[2,1,4,2], index: 2, kind: input, shape index: {}, may-alias: {1,2}]
  %s3 = inlined_call_operand.vmem [shape: f32[3,8,4], index: 3, kind: input, shape index: {}]
  %s4 = inlined_call_operand.vmem [shape: f32[8,1], index: 4, kind: input, shape index: {}]
  %s5 = inlined_call_operand.vmem [shape: f32[8,1], index: 5, kind: input, shape index: {}]
  %s6 = inlined_call_operand.hbm [shape: f32[2,8,16], index: 6, kind: output, shape index: {}]
  %s7 = sld [smem:[#allocation0]]
  $region57: #{trans_conv1d_act_norm.3} parent=0
    _
  %s9 = ssub.s32 1, %s7
  %s10 = scalar_select 0, %s9, %s7
  $region1: #{trans_conv1d_act_norm.3} parent=0
    #allocation3 [shape = 'u8[8192]{0}', space=vmem, size = 0x2000, scoped, tag = 'output window, operand 0']
    #allocation4 [shape = 's32[2]{0}', space=sflag, size = 0x8, scoped, tag = 'scoped memory for trans_conv1d_act_norm.3']
    %11 = vsyncpa [#allocation4], 0
    %s12 = scalar_lea.sflag [#allocation4], 1
    %13 = vsyncpa %s12, 0
    loop: start=0, step=1, limit=4
    $region2: #{trans_conv1d_act_norm.3} parent=1 // loop_pre_header
      _
    $region3: #{trans_conv1d_act_norm.3} parent=1 // loop_header
      %s15 = sphi 0, %s19
      %p16 = scmp.ge.s32.totalorder %s15, 4
      %s22 = sphi 0, %s34
      %s23 = sphi 0, %s30
      %s24 = sphi 0, %s22
      %s25 = sphi 0, %s23
      %s26 = sphi 0, %s24
      %s27 = sphi 0, %s25
      %s39 = sphi 0, %s41
      %s42 = sphi 0, %s39
      %s43 = sphi 0, %s42
      %s59 = sphi 0, %s43
      %s67 = sphi 0, %s69
      %s70 = sphi 0, %s67
      %s71 = sphi 0, %s70
      %s87 = sphi 0, %s71
      %s95 = sphi 0, %s97
      %s98 = sphi 0, %s95
      %s99 = sphi 0, %s98
      %s115 = sphi 0, %s99
      %s119 = sphi 0, %s119
      %s121 = sphi 0, %s119
      %s122 = sphi 0, %s121
      %s136 = sphi 0, %s122
      %s140 = sphi 0, %s140
      %s142 = sphi 0, %s140
      %s143 = sphi 0, %s142
      %s157 = sphi 0, %s143
      %s161 = sphi 0, %s161
      %s163 = sphi 0, %s161
      %s164 = sphi 0, %s163
      %s178 = sphi 0, %s164
      %s186 = sphi 0, %s188
      %s189 = sphi 0, %s186
      %s190 = sphi 0, %s189
      %s206 = sphi 0, %s190
    $region4: #{trans_conv1d_act_norm.3} parent=1 // loop_header_branch
      %18 = sbr.rel (%p16) target = $region8
    $region5: #{trans_conv1d_act_norm.3} parent=1 // loop_body
      %s20 = ssub.s32 %s15, 1
      %s21 = ssub.s32 %s15, 2
      %s28 = sadd.s32 1, %s23
      %p29 = scmp.ge.s32.totalorder %s28, 1
      %s30 = scalar_select %p29, 0, %s28
      %s31 = sadd.s32 1, %s22
      %s32 = scalar_select %p29, %s31, %s22
      %p33 = scmp.ge.s32.totalorder %s32, 2
      %s34 = scalar_select %p33, 0, %s32
      %s35 = ssub.s32 %s22, %s34
      %s36 = ssub.s32 %s23, %s30
      %s37 = sor.u32 %s35, %s36
      %p38 = scmp.eq.s32.totalorder %s37, 0
      %s40 = sadd.s32 %s39, 1
      %s41 = scalar_select %p38, %s39, %s40
      %p44 = pneg %p38
      %p45 = scmp.eq.s32.totalorder %s15, 1
      %p46 = por %p44, %p45
      %p47 = scmp.ne.s32.totalorder %s39, %s42
      %p48 = scmp.eq.s32.totalorder %s15, 0
      %p49 = por %p47, %p48
      %p50 = scmp.ne.s32.totalorder %s39, %s42
      %p51 = scmp.eq.s32.totalorder %s20, 1
      %p52 = por %p50, %p51
      %p53 = scmp.ne.s32.totalorder %s42, %s43
      %p54 = scmp.eq.s32.totalorder %s20, 0
      %p55 = por %p53, %p54
      %p56 = scmp.ne.s32.totalorder %s42, %s43
      %p57 = scmp.eq.s32.totalorder %s21, 1
      %p58 = por %p56, %p57
      %p60 = scmp.ne.s32.totalorder %s43, %s59
      %p61 = scmp.eq.s32.totalorder %s21, 0
      %p62 = por %p60, %p61
      %s63 = ssub.s32 %s22, %s34
      %s64 = ssub.s32 %s23, %s30
      %s65 = sor.u32 %s63, %s64
      %p66 = scmp.eq.s32.totalorder %s65, 0
      %s68 = sadd.s32 %s67, 1
      %s69 = scalar_select %p66, %s67, %s68
      %p72 = pneg %p66
      %p73 = scmp.eq.s32.totalorder %s15, 1
      %p74 = por %p72, %p73
      %p75 = scmp.ne.s32.totalorder %s67, %s70
      %p76 = scmp.eq.s32.totalorder %s15, 0
      %p77 = por %p75, %p76
      %p78 = scmp.ne.s32.totalorder %s67, %s70
      %p79 = scmp.eq.s32.totalorder %s20, 1
      %p80 = por %p78, %p79
      %p81 = scmp.ne.s32.totalorder %s70, %s71
      %p82 = scmp.eq.s32.totalorder %s20, 0
      %p83 = por %p81, %p82
      %p84 = scmp.ne.s32.totalorder %s70, %s71
      %p85 = scmp.eq.s32.totalorder %s21, 1
      %p86 = por %p84, %p85
      %p88 = scmp.ne.s32.totalorder %s71, %s87
      %p89 = scmp.eq.s32.totalorder %s21, 0
      %p90 = por %p88, %p89
      %s91 = ssub.s32 %s22, %s34
      %s92 = ssub.s32 %s23, %s30
      %s93 = sor.u32 %s91, %s92
      %p94 = scmp.eq.s32.totalorder %s93, 0
      %s96 = sadd.s32 %s95, 1
      %s97 = scalar_select %p94, %s95, %s96
      %p100 = pneg %p94
      %p101 = scmp.eq.s32.totalorder %s15, 1
      %p102 = por %p100, %p101
      %p103 = scmp.ne.s32.totalorder %s95, %s98
      %p104 = scmp.eq.s32.totalorder %s15, 0
      %p105 = por %p103, %p104
      %p106 = scmp.ne.s32.totalorder %s95, %s98
      %p107 = scmp.eq.s32.totalorder %s20, 1
      %p108 = por %p106, %p107
      %p109 = scmp.ne.s32.totalorder %s98, %s99
      %p110 = scmp.eq.s32.totalorder %s20, 0
      %p111 = por %p109, %p110
      %p112 = scmp.ne.s32.totalorder %s98, %s99
      %p113 = scmp.eq.s32.totalorder %s21, 1
      %p114 = por %p112, %p113
      %p116 = scmp.ne.s32.totalorder %s99, %s115
      %p117 = scmp.eq.s32.totalorder %s21, 0
      %p118 = por %p116, %p117
      %s120 = sadd.s32 %s119, 1
      %p123 = scmp.eq.s32.totalorder %s15, 1
      %p124 = scmp.ne.s32.totalorder %s119, %s121
      %p125 = scmp.eq.s32.totalorder %s15, 0
      %p126 = por %p124, %p125
      %p127 = scmp.ne.s32.totalorder %s119, %s121
      %p128 = scmp.eq.s32.totalorder %s20, 1
      %p129 = por %p127, %p128
      %p130 = scmp.ne.s32.totalorder %s121, %s122
      %p131 = scmp.eq.s32.totalorder %s20, 0
      %p132 = por %p130, %p131
      %p133 = scmp.ne.s32.totalorder %s121, %s122
      %p134 = scmp.eq.s32.totalorder %s21, 1
      %p135 = por %p133, %p134
      %p137 = scmp.ne.s32.totalorder %s122, %s136
      %p138 = scmp.eq.s32.totalorder %s21, 0
      %p139 = por %p137, %p138
      %s141 = sadd.s32 %s140, 1
      %p144 = scmp.eq.s32.totalorder %s15, 1
      %p145 = scmp.ne.s32.totalorder %s140, %s142
      %p146 = scmp.eq.s32.totalorder %s15, 0
      %p147 = por %p145, %p146
      %p148 = scmp.ne.s32.totalorder %s140, %s142
      %p149 = scmp.eq.s32.totalorder %s20, 1
      %p150 = por %p148, %p149
      %p151 = scmp.ne.s32.totalorder %s142, %s143
      %p152 = scmp.eq.s32.totalorder %s20, 0
      %p153 = por %p151, %p152
      %p154 = scmp.ne.s32.totalorder %s142, %s143
      %p155 = scmp.eq.s32.totalorder %s21, 1
      %p156 = por %p154, %p155
      %p158 = scmp.ne.s32.totalorder %s143, %s157
      %p159 = scmp.eq.s32.totalorder %s21, 0
      %p160 = por %p158, %p159
      %s162 = sadd.s32 %s161, 1
      %p165 = scmp.eq.s32.totalorder %s15, 1
      %p166 = scmp.ne.s32.totalorder %s161, %s163
      %p167 = scmp.eq.s32.totalorder %s15, 0
      %p168 = por %p166, %p167
      %p169 = scmp.ne.s32.totalorder %s161, %s163
      %p170 = scmp.eq.s32.totalorder %s20, 1
      %p171 = por %p169, %p170
      %p172 = scmp.ne.s32.totalorder %s163, %s164
      %p173 = scmp.eq.s32.totalorder %s20, 0
      %p174 = por %p172, %p173
      %p175 = scmp.ne.s32.totalorder %s163, %s164
      %p176 = scmp.eq.s32.totalorder %s21, 1
      %p177 = por %p175, %p176
      %p179 = scmp.ne.s32.totalorder %s164, %s178
      %p180 = scmp.eq.s32.totalorder %s21, 0
      %p181 = por %p179, %p180
      %s182 = ssub.s32 %s22, %s34
      %s183 = ssub.s32 %s23, %s30
      %s184 = sor.u32 %s182, %s183
      %p185 = scmp.eq.s32.totalorder %s184, 0
      %s187 = sadd.s32 %s186, 1
      %s188 = scalar_select %p185, %s186, %s187
      %p191 = pneg %p185
      %p192 = scmp.eq.s32.totalorder %s15, 1
      %p193 = por %p191, %p192
      %p194 = scmp.ne.s32.totalorder %s186, %s189
      %p195 = scmp.eq.s32.totalorder %s15, 0
      %p196 = por %p194, %p195
      %p197 = scmp.ne.s32.totalorder %s186, %s189
      %p198 = scmp.eq.s32.totalorder %s20, 1
      %p199 = por %p197, %p198
      %p200 = scmp.ne.s32.totalorder %s189, %s190
      %p201 = scmp.eq.s32.totalorder %s20, 0
      %p202 = por %p200, %p201
      %p203 = scmp.ne.s32.totalorder %s189, %s190
      %p204 = scmp.eq.s32.totalorder %s21, 1
      %p205 = por %p203, %p204
      %p207 = scmp.ne.s32.totalorder %s190, %s206
      %p208 = scmp.eq.s32.totalorder %s21, 0
      %p209 = por %p207, %p208
      %p210 = scmp.le.s32.totalorder 1, %s15
      %p211 = scmp.lt.s32.totalorder %s15, 3
      %p212 = pnand %p210, %p211
      %p213 = pneg %p212
      // Predicated region
      $region9: #{trans_conv1d_act_norm.3} parent=5 // pred_check
        _
      $region10: #{trans_conv1d_act_norm.3} parent=5 // pred_check_branch
        %215 = sbr.rel (%p212) target = $region12
      $region11: #{trans_conv1d_act_norm.3} parent=5 // pred_region
        %s216 = ssub.s32 %s15, 1
        // Predicated region
        $region13: #{trans_conv1d_act_norm.3} parent=11 // pred_check
          %p217 = pneg %p132
        $region14: #{trans_conv1d_act_norm.3} parent=11 // pred_check_branch
          %219 = sbr.rel (%p217) target = $region16
        $region15: #{trans_conv1d_act_norm.3} parent=11 // pred_region
          _
        $region16: #{trans_conv1d_act_norm.3} parent=11 // pred_fallthru
          _
        // Predicated region
        $region17: #{trans_conv1d_act_norm.3} parent=11 // pred_check
          %p220 = pneg %p153
        $region18: #{trans_conv1d_act_norm.3} parent=11 // pred_check_branch
          %222 = sbr.rel (%p220) target = $region20
        $region19: #{trans_conv1d_act_norm.3} parent=11 // pred_region
          _
        $region20: #{trans_conv1d_act_norm.3} parent=11 // pred_fallthru
          _
        // Predicated region
        $region21: #{trans_conv1d_act_norm.3} parent=11 // pred_check
          %p223 = pneg %p174
        $region22: #{trans_conv1d_act_norm.3} parent=11 // pred_check_branch
          %225 = sbr.rel (%p223) target = $region24
        $region23: #{trans_conv1d_act_norm.3} parent=11 // pred_region
          _
        $region24: #{trans_conv1d_act_norm.3} parent=11 // pred_fallthru
          _
      $region12: #{trans_conv1d_act_norm.3} parent=5 // pred_fallthru
        _
      %p226 = scmp.lt.s32.totalorder %s15, 2
      // Predicated region
      $region25: #{trans_conv1d_act_norm.3} parent=5 // pred_check
        %p227 = pneg %p226
      $region26: #{trans_conv1d_act_norm.3} parent=5 // pred_check_branch
        %229 = sbr.rel (%p227) target = $region28
      $region27: #{trans_conv1d_act_norm.3} parent=5 // pred_region
        // Predicated region
        $region29: #{trans_conv1d_act_norm.3} parent=27 // pred_check
          %p230 = pneg %p49
        $region30: #{trans_conv1d_act_norm.3} parent=27 // pred_check_branch
          %232 = sbr.rel (%p230) target = $region32
        $region31: #{trans_conv1d_act_norm.3} parent=27 // pred_region
          %p233 = scmp.lt.s32.totalorder %s22, 1
          %s234 = scalar_select %p233, %s22, 1
          %p235 = scmp.lt.s32.totalorder %s23, 0
          %s236 = scalar_select %p235, %s23, 0
          %s237 = sadd.s32 %s236, %s234
          %s238 = smul.addr %s237, 4
          %s239 = scalar_lea.vmem %s0, %s238
        $region32: #{trans_conv1d_act_norm.3} parent=27 // pred_fallthru
          _
        // Predicated region
        $region33: #{trans_conv1d_act_norm.3} parent=27 // pred_check
          %p240 = pneg %p77
        $region34: #{trans_conv1d_act_norm.3} parent=27 // pred_check_branch
          %242 = sbr.rel (%p240) target = $region36
        $region35: #{trans_conv1d_act_norm.3} parent=27 // pred_region
          %p243 = scmp.lt.s32.totalorder %s22, 1
          %s244 = scalar_select %p243, %s22, 1
          %p245 = scmp.lt.s32.totalorder %s23, 0
          %s246 = scalar_select %p245, %s23, 0
          %s247 = sadd.s32 %s246, %s244
          %s248 = smul.addr %s247, 4
          %s249 = scalar_lea.vmem %s1, %s248
        $region36: #{trans_conv1d_act_norm.3} parent=27 // pred_fallthru
          _
        // Predicated region
        $region37: #{trans_conv1d_act_norm.3} parent=27 // pred_check
          %p250 = pneg %p105
        $region38: #{trans_conv1d_act_norm.3} parent=27 // pred_check_branch
          %252 = sbr.rel (%p250) target = $region40
        $region39: #{trans_conv1d_act_norm.3} parent=27 // pred_region
          %p253 = scmp.lt.s32.totalorder %s22, 1
          %s254 = scalar_select %p253, %s22, 1
          %p255 = scmp.lt.s32.totalorder %s23, 0
          %s256 = scalar_select %p255, %s23, 0
          %s257 = sadd.s32 %s256, %s254
          %s258 = smul.addr %s257, 4
          %s259 = scalar_lea.vmem %s2, %s258
        $region40: #{trans_conv1d_act_norm.3} parent=27 // pred_fallthru
          _
      $region28: #{trans_conv1d_act_norm.3} parent=5 // pred_fallthru
        _
      %p260 = scmp.le.s32.totalorder 1, %s15
      %p261 = scmp.lt.s32.totalorder %s15, 3
      %p262 = pnand %p260, %p261
      %p263 = pneg %p262
      // Predicated region
      $region41: #{trans_conv1d_act_norm.3} parent=5 // pred_check
        _
      $region42: #{trans_conv1d_act_norm.3} parent=5 // pred_check_branch
        %265 = sbr.rel (%p262) target = $region44
      $region43: #{trans_conv1d_act_norm.3} parent=5 // pred_region
        %s266 = ssub.s32 %s15, 1
        %p267 = scmp.lt.s32.totalorder %s24, 1
        %s268 = scalar_select %p267, %s24, 1
        %p269 = scmp.lt.s32.totalorder %s25, 0
        %s270 = scalar_select %p269, %s25, 0
        %s271 = sadd.s32 %s270, %s268
        %s272 = smul.addr %s271, 4
        %s273 = scalar_lea.vmem %s0, %s272
        %p274 = pneg %p55
        %p275 = pneg %p52
        %p276 = scmp.lt.s32.totalorder %s24, 1
        %s277 = scalar_select %p276, %s24, 1
        %p278 = scmp.lt.s32.totalorder %s25, 0
        %s279 = scalar_select %p278, %s25, 0
        %s280 = sadd.s32 %s279, %s277
        %s281 = smul.addr %s280, 4
        %s282 = scalar_lea.vmem %s1, %s281
        %p283 = pneg %p83
        %p284 = pneg %p80
        %p285 = scmp.lt.s32.totalorder %s24, 1
        %s286 = scalar_select %p285, %s24, 1
        %p287 = scmp.lt.s32.totalorder %s25, 0
        %s288 = scalar_select %p287, %s25, 0
        %s289 = sadd.s32 %s288, %s286
        %s290 = smul.addr %s289, 4
        %s291 = scalar_lea.vmem %s2, %s290
        %p292 = pneg %p111
        %p293 = pneg %p108
        %p294 = pneg %p132
        %p295 = pneg %p129
        %p296 = pneg %p153
        %p297 = pneg %p150
        %p298 = pneg %p174
        %p299 = pneg %p171
        %p300 = pneg %p202
        %p301 = pneg %p199
        %s302 = sand.u32 %s189, 1
        %s303 = scalar_lea.sflag [#allocation4], %s302
        %s304 = sand.u32 %s189, 1
        %s305 = smul.addr %s304, 8
        %s306 = scalar_lea.vmem [#allocation3], %s305
        %p307 = scmp.lt.s32.totalorder %s24, 1
        %s308 = scalar_select %p307, %s24, 1
        %p309 = scmp.lt.s32.totalorder %s25, 0
        %s310 = scalar_select %p309, %s25, 0
        %s311 = sadd.s32 %s310, %s308
        %s312 = smul.addr %s311, 4
        %s313 = scalar_lea.vmem %s0, %s312
        %p314 = scmp.lt.s32.totalorder %s24, 1
        %s315 = scalar_select %p314, %s24, 1
        %p316 = scmp.lt.s32.totalorder %s25, 0
        %s317 = scalar_select %p316, %s25, 0
        %s318 = sadd.s32 %s317, %s315
        %s319 = smul.addr %s318, 4
        %s320 = scalar_lea.vmem %s1, %s319
        %p321 = scmp.lt.s32.totalorder %s24, 1
        %s322 = scalar_select %p321, %s24, 1
        %p323 = scmp.lt.s32.totalorder %s25, 0
        %s324 = scalar_select %p323, %s25, 0
        %s325 = sadd.s32 %s324, %s322
        %s326 = smul.addr %s325, 4
        %s327 = scalar_lea.vmem %s2, %s326
        %v328 = vld [vmem:[%s320] sm:$0xf]
        %vm329 = vcmask 11264
        %330 = vst.msk [vmem:[#allocation2] sm:$0xf] %vm329, %v328
        %v331 = vld [vmem:[%s313] sm:$0xf]
        %333 = vrot.lane.b32.xlu0 %v331, 2
        %v334 = vpop.permute.xlu0 %333
        %vm336 = vcmask 142352
        %337 = vst.msk [vmem:[#allocation2] sm:$0xf] %vm336, %v334
        %v338 = vld [vmem:[%s327] sm:$0xf]
        %340 = vrot.lane.b32.xlu0 %v338, 18
        %v341 = vpop.permute.xlu0 %340
        %vm343 = vcmask 158864
        %344 = vst.msk [vmem:[#allocation2] sm:$0xf] %vm343, %v341
        %v345 = vld [vmem:[%s3] sm:$0xff]
        %v346 = vld [vmem:[#allocation2] sm:$0xf]
        %s347 = scalar_lea.vmem %s3, 8
        %v348 = vld [vmem:[%s347] sm:$0xff]
        %350 = vrot.lane.b32.xlu0 %v346, 126
        %v351 = vpop.permute.xlu0 %350
        %vm352 = vcmask 31744
        %v354 = vsel %vm352, %v348, 0
        %vm356 = vcmask 1043456
        %v357 = vsel %vm356, %v351, 0
        %359 = vmatprep.subr.mxu0 0.0
        %360 = vmatpush1.msra.mxu0 0.0
        %361 = vmatprep.subr.mxu0 0.0
        %362 = vmatpush1.msra.mxu0 0.0
        %363 = vmatprep.subr.mxu0 0.0
        %364 = vmatpush1.msra.mxu0 0.0
        %365 = vmatprep.subr.mxu0 0.0
        %366 = vmatpush1.msra.mxu0 0.0
        %367 = vmatprep.subr.mxu0 0.0
        %368 = vmatpush1.msra.mxu0 0.0
        %369 = vmatprep.subr.mxu0 0.0
        %370 = vmatpush1.msra.mxu0 0.0
        %371 = vmatprep.subr.mxu0 0.0
        %372 = vmatpush1.msra.mxu0 0.0
        %373 = vmatprep.subr.mxu0 0.0
        %374 = vmatpush1.msra.mxu0 0.0
        %375 = vmatprep.subr.mxu0 0.0
        %376 = vmatpush1.msra.mxu0 0.0
        %377 = vmatprep.subr.mxu0 0.0
        %378 = vmatpush1.msra.mxu0 0.0
        %379 = vmatprep.subr.mxu0 0.0
        %380 = vmatpush1.msra.mxu0 0.0
        %381 = vmatprep.subr.mxu0 0.0
        %382 = vmatpush1.msra.mxu0 0.0
        %383 = vmatprep.subr.mxu0 0.0
        %384 = vmatpush1.msra.mxu0 0.0
        %385 = vmatprep.subr.mxu0 0.0
        %386 = vmatpush1.msra.mxu0 0.0
        %387 = vmatprep.subr.mxu0 0.0
        %388 = vmatpush1.msra.mxu0 0.0
        %389 = vmatprep.subr.mxu0 0.0
        %390 = vmatpush1.msra.mxu0 %v357
        %391 = vmatprep.subr.mxu0 0.0
        %392 = vmatpush2.msra.mxu0 0.0
        %393 = vmatprep.subr.mxu0 0.0
        %394 = vmatpush2.msra.mxu0 0.0
        %395 = vmatprep.subr.mxu0 0.0
        %396 = vmatpush2.msra.mxu0 0.0
        %397 = vmatprep.subr.mxu0 0.0
        %398 = vmatpush2.msra.mxu0 0.0
        %399 = vmatprep.subr.mxu0 0.0
        %400 = vmatpush2.msra.mxu0 0.0
        %401 = vmatprep.subr.mxu0 0.0
        %402 = vmatpush2.msra.mxu0 0.0
        %403 = vmatprep.subr.mxu0 0.0
        %404 = vmatpush2.msra.mxu0 0.0
        %405 = vmatprep.subr.mxu0 0.0
        %406 = vmatpush2.msra.mxu0 0.0
        %407 = vmatprep.subr.mxu0 0.0
        %408 = vmatpush2.msra.mxu0 0.0
        %409 = vmatprep.subr.mxu0 0.0
        %410 = vmatpush2.msra.mxu0 0.0
        %411 = vmatprep.subr.mxu0 0.0
        %412 = vmatpush2.msra.mxu0 0.0
        %413 = vmatprep.subr.mxu0 0.0
        %414 = vmatpush2.msra.mxu0 0.0
        %415 = vmatprep.subr.mxu0 0.0
        %416 = vmatpush2.msra.mxu0 0.0
        %417 = vmatprep.subr.mxu0 0.0
        %418 = vmatpush2.msra.mxu0 0.0
        %419 = vmatprep.subr.mxu0 0.0
        %420 = vmatpush2.msra.mxu0 0.0
        %421 = vmatprep.subr.mxu0 0.0
        %422 = vmatpush2.msra.mxu0 0.0
        %423 = vmatprep.mubr.f32.mxu0 0.0
        %424 = vmatmul.mubr.f32.gmra.mxu0 %v354
        %v425 = vpop.f32.mrf.mxu0
        %v426 = vadd.f32 0.0, %v425
        %v427 = vpop.f32.mrf.mxu0
        %428 = vdwg.mxu0
        %429 = vrot.lane.b32.xlu0 %v346, 125
        %v430 = vpop.permute.xlu0 %429
        %v432 = vsel %vm352, %v345, 0
        %v434 = vsel %vm356, %v430, 0
        %436 = vmatprep.subr.mxu0 0.0
        %437 = vmatpush1.msra.mxu0 0.0
        %438 = vmatprep.subr.mxu0 0.0
        %439 = vmatpush1.msra.mxu0 0.0
        %440 = vmatprep.subr.mxu0 0.0
        %441 = vmatpush1.msra.mxu0 0.0
        %442 = vmatprep.subr.mxu0 0.0
        %443 = vmatpush1.msra.mxu0 0.0
        %444 = vmatprep.subr.mxu0 0.0
        %445 = vmatpush1.msra.mxu0 0.0
        %446 = vmatprep.subr.mxu0 0.0
        %447 = vmatpush1.msra.mxu0 0.0
        %448 = vmatprep.subr.mxu0 0.0
        %449 = vmatpush1.msra.mxu0 0.0
        %450 = vmatprep.subr.mxu0 0.0
        %451 = vmatpush1.msra.mxu0 0.0
        %452 = vmatprep.subr.mxu0 0.0
        %453 = vmatpush1.msra.mxu0 0.0
        %454 = vmatprep.subr.mxu0 0.0
        %455 = vmatpush1.msra.mxu0 0.0
        %456 = vmatprep.subr.mxu0 0.0
        %457 = vmatpush1.msra.mxu0 0.0
        %458 = vmatprep.subr.mxu0 0.0
        %459 = vmatpush1.msra.mxu0 0.0
        %460 = vmatprep.subr.mxu0 0.0
        %461 = vmatpush1.msra.mxu0 0.0
        %462 = vmatprep.subr.mxu0 0.0
        %463 = vmatpush1.msra.mxu0 0.0
        %464 = vmatprep.subr.mxu0 0.0
        %465 = vmatpush1.msra.mxu0 0.0
        %466 = vmatprep.subr.mxu0 0.0
        %467 = vmatpush1.msra.mxu0 %v434
        %468 = vmatprep.subr.mxu0 0.0
        %469 = vmatpush2.msra.mxu0 0.0
        %470 = vmatprep.subr.mxu0 0.0
        %471 = vmatpush2.msra.mxu0 0.0
        %472 = vmatprep.subr.mxu0 0.0
        %473 = vmatpush2.msra.mxu0 0.0
        %474 = vmatprep.subr.mxu0 0.0
        %475 = vmatpush2.msra.mxu0 0.0
        %476 = vmatprep.subr.mxu0 0.0
        %477 = vmatpush2.msra.mxu0 0.0
        %478 = vmatprep.subr.mxu0 0.0
        %479 = vmatpush2.msra.mxu0 0.0
        %480 = vmatprep.subr.mxu0 0.0
        %481 = vmatpush2.msra.mxu0 0.0
        %482 = vmatprep.subr.mxu0 0.0
        %483 = vmatpush2.msra.mxu0 0.0
        %484 = vmatprep.subr.mxu0 0.0
        %485 = vmatpush2.msra.mxu0 0.0
        %486 = vmatprep.subr.mxu0 0.0
        %487 = vmatpush2.msra.mxu0 0.0
        %488 = vmatprep.subr.mxu0 0.0
        %489 = vmatpush2.msra.mxu0 0.0
        %490 = vmatprep.subr.mxu0 0.0
        %491 = vmatpush2.msra.mxu0 0.0
        %492 = vmatprep.subr.mxu0 0.0
        %493 = vmatpush2.msra.mxu0 0.0
        %494 = vmatprep.subr.mxu0 0.0
        %495 = vmatpush2.msra.mxu0 0.0
        %496 = vmatprep.subr.mxu0 0.0
        %497 = vmatpush2.msra.mxu0 0.0
        %498 = vmatprep.subr.mxu0 0.0
        %499 = vmatpush2.msra.mxu0 0.0
        %500 = vmatprep.mubr.f32.mxu0 0.0
        %501 = vmatmul.mubr.f32.gmra.mxu0 %v432
        %v502 = vpop.f32.mrf.mxu0
        %v503 = vadd.f32 %v426, %v502
        %v504 = vpop.f32.mrf.mxu0
        %505 = vdwg.mxu0
        %s506 = scalar_lea.vmem %s3, 16
        %v507 = vld [vmem:[%s506] sm:$0xff]
        %508 = vrot.lane.b32.xlu0 %v346, 127
        %v509 = vpop.permute.xlu0 %508
        %v511 = vsel %vm352, %v507, 0
        %v513 = vsel %vm356, %v509, 0
        %515 = vmatprep.subr.mxu0 0.0
        %516 = vmatpush1.msra.mxu0 0.0
        %517 = vmatprep.subr.mxu0 0.0
        %518 = vmatpush1.msra.mxu0 0.0
        %519 = vmatprep.subr.mxu0 0.0
        %520 = vmatpush1.msra.mxu0 0.0
        %521 = vmatprep.subr.mxu0 0.0
        %522 = vmatpush1.msra.mxu0 0.0
        %523 = vmatprep.subr.mxu0 0.0
        %524 = vmatpush1.msra.mxu0 0.0
        %525 = vmatprep.subr.mxu0 0.0
        %526 = vmatpush1.msra.mxu0 0.0
        %527 = vmatprep.subr.mxu0 0.0
        %528 = vmatpush1.msra.mxu0 0.0
        %529 = vmatprep.subr.mxu0 0.0
        %530 = vmatpush1.msra.mxu0 0.0
        %531 = vmatprep.subr.mxu0 0.0
        %532 = vmatpush1.msra.mxu0 0.0
        %533 = vmatprep.subr.mxu0 0.0
        %534 = vmatpush1.msra.mxu0 0.0
        %535 = vmatprep.subr.mxu0 0.0
        %536 = vmatpush1.msra.mxu0 0.0
        %537 = vmatprep.subr.mxu0 0.0
        %538 = vmatpush1.msra.mxu0 0.0
        %539 = vmatprep.subr.mxu0 0.0
        %540 = vmatpush1.msra.mxu0 0.0
        %541 = vmatprep.subr.mxu0 0.0
        %542 = vmatpush1.msra.mxu0 0.0
        %543 = vmatprep.subr.mxu0 0.0
        %544 = vmatpush1.msra.mxu0 0.0
        %545 = vmatprep.subr.mxu0 0.0
        %546 = vmatpush1.msra.mxu0 %v513
        %547 = vmatprep.subr.mxu0 0.0
        %548 = vmatpush2.msra.mxu0 0.0
        %549 = vmatprep.subr.mxu0 0.0
        %550 = vmatpush2.msra.mxu0 0.0
        %551 = vmatprep.subr.mxu0 0.0
        %552 = vmatpush2.msra.mxu0 0.0
        %553 = vmatprep.subr.mxu0 0.0
        %554 = vmatpush2.msra.mxu0 0.0
        %555 = vmatprep.subr.mxu0 0.0
        %556 = vmatpush2.msra.mxu0 0.0
        %557 = vmatprep.subr.mxu0 0.0
        %558 = vmatpush2.msra.mxu0 0.0
        %559 = vmatprep.subr.mxu0 0.0
        %560 = vmatpush2.msra.mxu0 0.0
        %561 = vmatprep.subr.mxu0 0.0
        %562 = vmatpush2.msra.mxu0 0.0
        %563 = vmatprep.subr.mxu0 0.0
        %564 = vmatpush2.msra.mxu0 0.0
        %565 = vmatprep.subr.mxu0 0.0
        %566 = vmatpush2.msra.mxu0 0.0
        %567 = vmatprep.subr.mxu0 0.0
        %568 = vmatpush2.msra.mxu0 0.0
        %569 = vmatprep.subr.mxu0 0.0
        %570 = vmatpush2.msra.mxu0 0.0
        %571 = vmatprep.subr.mxu0 0.0
        %572 = vmatpush2.msra.mxu0 0.0
        %573 = vmatprep.subr.mxu0 0.0
        %574 = vmatpush2.msra.mxu0 0.0
        %575 = vmatprep.subr.mxu0 0.0
        %576 = vmatpush2.msra.mxu0 0.0
        %577 = vmatprep.subr.mxu0 0.0
        %578 = vmatpush2.msra.mxu0 0.0
        %579 = vmatprep.mubr.f32.mxu0 0.0
        %580 = vmatmul.mubr.f32.gmra.mxu0 %v511
        %v581 = vpop.f32.mrf.mxu0
        %v582 = vadd.f32 0.0, %v581
        %v583 = vpop.f32.mrf.mxu0
        %584 = vdwg.mxu0
        %v585 = vadd.f32 %v503, %v582
        %v586 = vld [vmem:[%s4] sm:$0xff]
        %588 = vset.pattern.permute.xlu0 0
        %589 = vperm.xlu0 %588, %v586
        %v590 = vpop.permute.xlu0 %589
        %v592 = vmul.f32 %v585, %v590
        %v593 = vld [vmem:[%s5] sm:$0xff]
        %595 = vset.pattern.permute.xlu0 0
        %596 = vperm.xlu0 %595, %v593
        %v597 = vpop.permute.xlu0 %596
        %v599 = vadd.f32 %v592, %v597
        %v600 = vmax.f32 %v599, 0.0
        %vm601 = vcmask 130048
        %602 = vst.msk [vmem:[%s306] sm:$0xff] %vm601, %v600
        %s603 = sand.u32 %s189, 1
        %s604 = scalar_lea.sflag [#allocation4], %s603
        %s605 = sand.u32 %s189, 1
        %s606 = smul.addr %s605, 8
        %s607 = scalar_lea.vmem [#allocation3], %s606
        // Predicated region
        $region45: #{trans_conv1d_act_norm.3} parent=43 // pred_check
          %p608 = pneg %p199
        $region46: #{trans_conv1d_act_norm.3} parent=43 // pred_check_branch
          %610 = sbr.rel (%p608) target = $region48
        $region47: #{trans_conv1d_act_norm.3} parent=43 // pred_region
          %s612 = ssub.s32 128, 128
          %613 = vsyncadd %s604, %s612
          %s614 = sadd.s32 %s25, %s24
          %s615 = smul.addr %s614, 128
          %s616 = scalar_lea.hbm %s6, %s615
          %s618 = sshll.u32 %s607, 4
          %s619 = int_to_ptr.vmem [resolvable:$true] %s618
          %621 = dma.vmem_to_hbm [thread:$0]  %s619, 128, %s616, %s604
        $region48: #{trans_conv1d_act_norm.3} parent=43 // pred_fallthru
          _
      $region44: #{trans_conv1d_act_norm.3} parent=5 // pred_fallthru
        _
      %p622 = scmp.le.s32.totalorder 2, %s15
      // Predicated region
      $region49: #{trans_conv1d_act_norm.3} parent=5 // pred_check
        %p623 = pneg %p622
      $region50: #{trans_conv1d_act_norm.3} parent=5 // pred_check_branch
        %625 = sbr.rel (%p623) target = $region52
      $region51: #{trans_conv1d_act_norm.3} parent=5 // pred_region
        %s626 = ssub.s32 %s15, 2
        // Predicated region
        $region53: #{trans_conv1d_act_norm.3} parent=51 // pred_check
          %p627 = pneg %p205
        $region54: #{trans_conv1d_act_norm.3} parent=51 // pred_check_branch
          %629 = sbr.rel (%p627) target = $region56
        $region55: #{trans_conv1d_act_norm.3} parent=51 // pred_region
          %s630 = sand.u32 %s190, 1
          %s631 = scalar_lea.sflag [#allocation4], %s630
          %s632 = sand.u32 %s190, 1
          %s633 = smul.addr %s632, 8
          %s634 = scalar_lea.vmem [#allocation3], %s633
          %635 = dma.done %s631, 128
        $region56: #{trans_conv1d_act_norm.3} parent=51 // pred_fallthru
          _
      $region52: #{trans_conv1d_act_norm.3} parent=5 // pred_fallthru
        _
    $region6: #{trans_conv1d_act_norm.3} parent=1 // loop_footer
      %s19 = sadd.s32 1, %s15
    $region7: #{trans_conv1d_act_norm.3} parent=1 // loop_footer_branch
      %14 = sbr.rel target = $region3
    $region8: #{trans_conv1d_act_norm.3} parent=1 // loop_exit
      _
    %636 = vsyncpa [#allocation4], 1
    %s637 = scalar_lea.sflag [#allocation4], 1
    %638 = vsyncpa %s637, 1

// kernel: trans_conv1d_act_norm.2
$region0: #{trans_conv1d_act_norm.2}
  #allocation0 [shape = 'u32[]', space=smem, size = 0x4, offset = 0x4, fixed_abs, tag = 'smem constant byte address 0x4 - core index']
  #allocation1 [shape = 'u32[144,128]{1,0:T(1,128)}', space=vmem, size = 0x12000, scoped, tag = 'internal scratch']
  #allocation2 [shape = 'f32[4,20]{1,0:T(4,128)}', space=vmem, size = 0x800, scoped, tag = 'scratch operand']
  %s0 = inlined_call_operand.vmem [shape: f32[2,4,16], index: 0, kind: input, shape index: {}]
  %s1 = inlined_call_operand.vmem [shape: f32[2,1,4,2], index: 1, kind: input, shape index: {}, may-alias: {1,2}]
  %s2 = inlined_call_operand.vmem [shape: f32[2,1,4,2], index: 2, kind: input, shape index: {}, may-alias: {1,2}]
  %s3 = inlined_call_operand.vmem [shape: f32[3,8,4], index: 3, kind: input, shape index: {}]
  %s4 = inlined_call_operand.vmem [shape: f32[2,1,8,1], index: 4, kind: output, shape index: {0}]
  %s5 = inlined_call_operand.vmem [shape: f32[2,1,8,1], index: 5, kind: output, shape index: {1}]
  %6 = xla_tuple %s4, %s5
  %s7 = sld [smem:[#allocation0]]
  $region57: #{trans_conv1d_act_norm.2} parent=0
    _
  %s9 = ssub.s32 1, %s7
  %s10 = scalar_select 0, %s9, %s7
  loop: start=0, step=1, limit=4
  $region2: #{trans_conv1d_act_norm.2} parent=0 // loop_pre_header
    _
  $region3: #{trans_conv1d_act_norm.2} parent=0 // loop_header
    %s12 = sphi 0, %s16
    %p13 = scmp.ge.s32.totalorder %s12, 4
    %s19 = sphi 0, %s31
    %s20 = sphi 0, %s27
    %s21 = sphi 0, %s19
    %s22 = sphi 0, %s20
    %s23 = sphi 0, %s21
    %s24 = sphi 0, %s22
    %s36 = sphi 0, %s38
    %s39 = sphi 0, %s36
    %s40 = sphi 0, %s39
    %s56 = sphi 0, %s40
    %s64 = sphi 0, %s66
    %s67 = sphi 0, %s64
    %s68 = sphi 0, %s67
    %s84 = sphi 0, %s68
    %s92 = sphi 0, %s94
    %s95 = sphi 0, %s92
    %s96 = sphi 0, %s95
    %s112 = sphi 0, %s96
    %s116 = sphi 0, %s116
    %s118 = sphi 0, %s116
    %s119 = sphi 0, %s118
    %s133 = sphi 0, %s119
    %s141 = sphi 0, %s143
    %s144 = sphi 0, %s141
    %s145 = sphi 0, %s144
    %s161 = sphi 0, %s145
    %s169 = sphi 0, %s171
    %s172 = sphi 0, %s169
    %s173 = sphi 0, %s172
    %s189 = sphi 0, %s173
  $region4: #{trans_conv1d_act_norm.2} parent=0 // loop_header_branch
    %15 = sbr.rel (%p13) target = $region8
  $region5: #{trans_conv1d_act_norm.2} parent=0 // loop_body
    %s17 = ssub.s32 %s12, 1
    %s18 = ssub.s32 %s12, 2
    %s25 = sadd.s32 1, %s20
    %p26 = scmp.ge.s32.totalorder %s25, 1
    %s27 = scalar_select %p26, 0, %s25
    %s28 = sadd.s32 1, %s19
    %s29 = scalar_select %p26, %s28, %s19
    %p30 = scmp.ge.s32.totalorder %s29, 2
    %s31 = scalar_select %p30, 0, %s29
    %s32 = ssub.s32 %s19, %s31
    %s33 = ssub.s32 %s20, %s27
    %s34 = sor.u32 %s32, %s33
    %p35 = scmp.eq.s32.totalorder %s34, 0
    %s37 = sadd.s32 %s36, 1
    %s38 = scalar_select %p35, %s36, %s37
    %p41 = pneg %p35
    %p42 = scmp.eq.s32.totalorder %s12, 1
    %p43 = por %p41, %p42
    %p44 = scmp.ne.s32.totalorder %s36, %s39
    %p45 = scmp.eq.s32.totalorder %s12, 0
    %p46 = por %p44, %p45
    %p47 = scmp.ne.s32.totalorder %s36, %s39
    %p48 = scmp.eq.s32.totalorder %s17, 1
    %p49 = por %p47, %p48
    %p50 = scmp.ne.s32.totalorder %s39, %s40
    %p51 = scmp.eq.s32.totalorder %s17, 0
    %p52 = por %p50, %p51
    %p53 = scmp.ne.s32.totalorder %s39, %s40
    %p54 = scmp.eq.s32.totalorder %s18, 1
    %p55 = por %p53, %p54
    %p57 = scmp.ne.s32.totalorder %s40, %s56
    %p58 = scmp.eq.s32.totalorder %s18, 0
    %p59 = por %p57, %p58
    %s60 = ssub.s32 %s19, %s31
    %s61 = ssub.s32 %s20, %s27
    %s62 = sor.u32 %s60, %s61
    %p63 = scmp.eq.s32.totalorder %s62, 0
    %s65 = sadd.s32 %s64, 1
    %s66 = scalar_select %p63, %s64, %s65
    %p69 = pneg %p63
    %p70 = scmp.eq.s32.totalorder %s12, 1
    %p71 = por %p69, %p70
    %p72 = scmp.ne.s32.totalorder %s64, %s67
    %p73 = scmp.eq.s32.totalorder %s12, 0
    %p74 = por %p72, %p73
    %p75 = scmp.ne.s32.totalorder %s64, %s67
    %p76 = scmp.eq.s32.totalorder %s17, 1
    %p77 = por %p75, %p76
    %p78 = scmp.ne.s32.totalorder %s67, %s68
    %p79 = scmp.eq.s32.totalorder %s17, 0
    %p80 = por %p78, %p79
    %p81 = scmp.ne.s32.totalorder %s67, %s68
    %p82 = scmp.eq.s32.totalorder %s18, 1
    %p83 = por %p81, %p82
    %p85 = scmp.ne.s32.totalorder %s68, %s84
    %p86 = scmp.eq.s32.totalorder %s18, 0
    %p87 = por %p85, %p86
    %s88 = ssub.s32 %s19, %s31
    %s89 = ssub.s32 %s20, %s27
    %s90 = sor.u32 %s88, %s89
    %p91 = scmp.eq.s32.totalorder %s90, 0
    %s93 = sadd.s32 %s92, 1
    %s94 = scalar_select %p91, %s92, %s93
    %p97 = pneg %p91
    %p98 = scmp.eq.s32.totalorder %s12, 1
    %p99 = por %p97, %p98
    %p100 = scmp.ne.s32.totalorder %s92, %s95
    %p101 = scmp.eq.s32.totalorder %s12, 0
    %p102 = por %p100, %p101
    %p103 = scmp.ne.s32.totalorder %s92, %s95
    %p104 = scmp.eq.s32.totalorder %s17, 1
    %p105 = por %p103, %p104
    %p106 = scmp.ne.s32.totalorder %s95, %s96
    %p107 = scmp.eq.s32.totalorder %s17, 0
    %p108 = por %p106, %p107
    %p109 = scmp.ne.s32.totalorder %s95, %s96
    %p110 = scmp.eq.s32.totalorder %s18, 1
    %p111 = por %p109, %p110
    %p113 = scmp.ne.s32.totalorder %s96, %s112
    %p114 = scmp.eq.s32.totalorder %s18, 0
    %p115 = por %p113, %p114
    %s117 = sadd.s32 %s116, 1
    %p120 = scmp.eq.s32.totalorder %s12, 1
    %p121 = scmp.ne.s32.totalorder %s116, %s118
    %p122 = scmp.eq.s32.totalorder %s12, 0
    %p123 = por %p121, %p122
    %p124 = scmp.ne.s32.totalorder %s116, %s118
    %p125 = scmp.eq.s32.totalorder %s17, 1
    %p126 = por %p124, %p125
    %p127 = scmp.ne.s32.totalorder %s118, %s119
    %p128 = scmp.eq.s32.totalorder %s17, 0
    %p129 = por %p127, %p128
    %p130 = scmp.ne.s32.totalorder %s118, %s119
    %p131 = scmp.eq.s32.totalorder %s18, 1
    %p132 = por %p130, %p131
    %p134 = scmp.ne.s32.totalorder %s119, %s133
    %p135 = scmp.eq.s32.totalorder %s18, 0
    %p136 = por %p134, %p135
    %s137 = ssub.s32 %s19, %s31
    %s138 = ssub.s32 %s20, %s27
    %s139 = sor.u32 %s137, %s138
    %p140 = scmp.eq.s32.totalorder %s139, 0
    %s142 = sadd.s32 %s141, 1
    %s143 = scalar_select %p140, %s141, %s142
    %p146 = pneg %p140
    %p147 = scmp.eq.s32.totalorder %s12, 1
    %p148 = por %p146, %p147
    %p149 = scmp.ne.s32.totalorder %s141, %s144
    %p150 = scmp.eq.s32.totalorder %s12, 0
    %p151 = por %p149, %p150
    %p152 = scmp.ne.s32.totalorder %s141, %s144
    %p153 = scmp.eq.s32.totalorder %s17, 1
    %p154 = por %p152, %p153
    %p155 = scmp.ne.s32.totalorder %s144, %s145
    %p156 = scmp.eq.s32.totalorder %s17, 0
    %p157 = por %p155, %p156
    %p158 = scmp.ne.s32.totalorder %s144, %s145
    %p159 = scmp.eq.s32.totalorder %s18, 1
    %p160 = por %p158, %p159
    %p162 = scmp.ne.s32.totalorder %s145, %s161
    %p163 = scmp.eq.s32.totalorder %s18, 0
    %p164 = por %p162, %p163
    %s165 = ssub.s32 %s19, %s31
    %s166 = ssub.s32 %s20, %s27
    %s167 = sor.u32 %s165, %s166
    %p168 = scmp.eq.s32.totalorder %s167, 0
    %s170 = sadd.s32 %s169, 1
    %s171 = scalar_select %p168, %s169, %s170
    %p174 = pneg %p168
    %p175 = scmp.eq.s32.totalorder %s12, 1
    %p176 = por %p174, %p175
    %p177 = scmp.ne.s32.totalorder %s169, %s172
    %p178 = scmp.eq.s32.totalorder %s12, 0
    %p179 = por %p177, %p178
    %p180 = scmp.ne.s32.totalorder %s169, %s172
    %p181 = scmp.eq.s32.totalorder %s17, 1
    %p182 = por %p180, %p181
    %p183 = scmp.ne.s32.totalorder %s172, %s173
    %p184 = scmp.eq.s32.totalorder %s17, 0
    %p185 = por %p183, %p184
    %p186 = scmp.ne.s32.totalorder %s172, %s173
    %p187 = scmp.eq.s32.totalorder %s18, 1
    %p188 = por %p186, %p187
    %p190 = scmp.ne.s32.totalorder %s173, %s189
    %p191 = scmp.eq.s32.totalorder %s18, 0
    %p192 = por %p190, %p191
    %p193 = scmp.le.s32.totalorder 1, %s12
    %p194 = scmp.lt.s32.totalorder %s12, 3
    %p195 = pnand %p193, %p194
    %p196 = pneg %p195
    // Predicated region
    $region9: #{trans_conv1d_act_norm.2} parent=5 // pred_check
      _
    $region10: #{trans_conv1d_act_norm.2} parent=5 // pred_check_branch
      %198 = sbr.rel (%p195) target = $region12
    $region11: #{trans_conv1d_act_norm.2} parent=5 // pred_region
      %s199 = ssub.s32 %s12, 1
      // Predicated region
      $region13: #{trans_conv1d_act_norm.2} parent=11 // pred_check
        %p200 = pneg %p129
      $region14: #{trans_conv1d_act_norm.2} parent=11 // pred_check_branch
        %202 = sbr.rel (%p200) target = $region16
      $region15: #{trans_conv1d_act_norm.2} parent=11 // pred_region
        _
      $region16: #{trans_conv1d_act_norm.2} parent=11 // pred_fallthru
        _
    $region12: #{trans_conv1d_act_norm.2} parent=5 // pred_fallthru
      _
    %p203 = scmp.lt.s32.totalorder %s12, 2
    // Predicated region
    $region17: #{trans_conv1d_act_norm.2} parent=5 // pred_check
      %p204 = pneg %p203
    $region18: #{trans_conv1d_act_norm.2} parent=5 // pred_check_branch
      %206 = sbr.rel (%p204) target = $region20
    $region19: #{trans_conv1d_act_norm.2} parent=5 // pred_region
      // Predicated region
      $region21: #{trans_conv1d_act_norm.2} parent=19 // pred_check
        %p207 = pneg %p46
      $region22: #{trans_conv1d_act_norm.2} parent=19 // pred_check_branch
        %209 = sbr.rel (%p207) target = $region24
      $region23: #{trans_conv1d_act_norm.2} parent=19 // pred_region
        %p210 = scmp.lt.s32.totalorder %s19, 1
        %s211 = scalar_select %p210, %s19, 1
        %p212 = scmp.lt.s32.totalorder %s20, 0
        %s213 = scalar_select %p212, %s20, 0
        %s214 = sadd.s32 %s213, %s211
        %s215 = smul.addr %s214, 4
        %s216 = scalar_lea.vmem %s0, %s215
      $region24: #{trans_conv1d_act_norm.2} parent=19 // pred_fallthru
        _
      // Predicated region
      $region25: #{trans_conv1d_act_norm.2} parent=19 // pred_check
        %p217 = pneg %p74
      $region26: #{trans_conv1d_act_norm.2} parent=19 // pred_check_branch
        %219 = sbr.rel (%p217) target = $region28
      $region27: #{trans_conv1d_act_norm.2} parent=19 // pred_region
        %p220 = scmp.lt.s32.totalorder %s19, 1
        %s221 = scalar_select %p220, %s19, 1
        %p222 = scmp.lt.s32.totalorder %s20, 0
        %s223 = scalar_select %p222, %s20, 0
        %s224 = sadd.s32 %s223, %s221
        %s225 = smul.addr %s224, 4
        %s226 = scalar_lea.vmem %s1, %s225
      $region28: #{trans_conv1d_act_norm.2} parent=19 // pred_fallthru
        _
      // Predicated region
      $region29: #{trans_conv1d_act_norm.2} parent=19 // pred_check
        %p227 = pneg %p102
      $region30: #{trans_conv1d_act_norm.2} parent=19 // pred_check_branch
        %229 = sbr.rel (%p227) target = $region32
      $region31: #{trans_conv1d_act_norm.2} parent=19 // pred_region
        %p230 = scmp.lt.s32.totalorder %s19, 1
        %s231 = scalar_select %p230, %s19, 1
        %p232 = scmp.lt.s32.totalorder %s20, 0
        %s233 = scalar_select %p232, %s20, 0
        %s234 = sadd.s32 %s233, %s231
        %s235 = smul.addr %s234, 4
        %s236 = scalar_lea.vmem %s2, %s235
      $region32: #{trans_conv1d_act_norm.2} parent=19 // pred_fallthru
        _
    $region20: #{trans_conv1d_act_norm.2} parent=5 // pred_fallthru
      _
    %p237 = scmp.le.s32.totalorder 1, %s12
    %p238 = scmp.lt.s32.totalorder %s12, 3
    %p239 = pnand %p237, %p238
    %p240 = pneg %p239
    // Predicated region
    $region33: #{trans_conv1d_act_norm.2} parent=5 // pred_check
      _
    $region34: #{trans_conv1d_act_norm.2} parent=5 // pred_check_branch
      %242 = sbr.rel (%p239) target = $region36
    $region35: #{trans_conv1d_act_norm.2} parent=5 // pred_region
      %s243 = ssub.s32 %s12, 1
      %p244 = scmp.lt.s32.totalorder %s21, 1
      %s245 = scalar_select %p244, %s21, 1
      %p246 = scmp.lt.s32.totalorder %s22, 0
      %s247 = scalar_select %p246, %s22, 0
      %s248 = sadd.s32 %s247, %s245
      %s249 = smul.addr %s248, 4
      %s250 = scalar_lea.vmem %s0, %s249
      %p251 = pneg %p52
      %p252 = pneg %p49
      %p253 = scmp.lt.s32.totalorder %s21, 1
      %s254 = scalar_select %p253, %s21, 1
      %p255 = scmp.lt.s32.totalorder %s22, 0
      %s256 = scalar_select %p255, %s22, 0
      %s257 = sadd.s32 %s256, %s254
      %s258 = smul.addr %s257, 4
      %s259 = scalar_lea.vmem %s1, %s258
      %p260 = pneg %p80
      %p261 = pneg %p77
      %p262 = scmp.lt.s32.totalorder %s21, 1
      %s263 = scalar_select %p262, %s21, 1
      %p264 = scmp.lt.s32.totalorder %s22, 0
      %s265 = scalar_select %p264, %s22, 0
      %s266 = sadd.s32 %s265, %s263
      %s267 = smul.addr %s266, 4
      %s268 = scalar_lea.vmem %s2, %s267
      %p269 = pneg %p108
      %p270 = pneg %p105
      %p271 = pneg %p129
      %p272 = pneg %p126
      %p273 = pneg %p157
      %p274 = pneg %p154
      %p275 = scmp.lt.s32.totalorder %s21, 1
      %s276 = scalar_select %p275, %s21, 1
      %p277 = scmp.lt.s32.totalorder %s22, 0
      %s278 = scalar_select %p277, %s22, 0
      %s279 = sadd.s32 %s278, %s276
      %s280 = smul.addr %s279, 8
      %s281 = scalar_lea.vmem %s4, %s280
      %p282 = pneg %p185
      %p283 = pneg %p182
      %p284 = scmp.lt.s32.totalorder %s21, 1
      %s285 = scalar_select %p284, %s21, 1
      %p286 = scmp.lt.s32.totalorder %s22, 0
      %s287 = scalar_select %p286, %s22, 0
      %s288 = sadd.s32 %s287, %s285
      %s289 = smul.addr %s288, 8
      %s290 = scalar_lea.vmem %s5, %s289
      %p291 = scmp.lt.s32.totalorder %s21, 1
      %s292 = scalar_select %p291, %s21, 1
      %p293 = scmp.lt.s32.totalorder %s22, 0
      %s294 = scalar_select %p293, %s22, 0
      %s295 = sadd.s32 %s294, %s292
      %s296 = smul.addr %s295, 4
      %s297 = scalar_lea.vmem %s0, %s296
      %p298 = scmp.lt.s32.totalorder %s21, 1
      %s299 = scalar_select %p298, %s21, 1
      %p300 = scmp.lt.s32.totalorder %s22, 0
      %s301 = scalar_select %p300, %s22, 0
      %s302 = sadd.s32 %s301, %s299
      %s303 = smul.addr %s302, 4
      %s304 = scalar_lea.vmem %s1, %s303
      %p305 = scmp.lt.s32.totalorder %s21, 1
      %s306 = scalar_select %p305, %s21, 1
      %p307 = scmp.lt.s32.totalorder %s22, 0
      %s308 = scalar_select %p307, %s22, 0
      %s309 = sadd.s32 %s308, %s306
      %s310 = smul.addr %s309, 4
      %s311 = scalar_lea.vmem %s2, %s310
      %p312 = scmp.lt.s32.totalorder %s21, 1
      %s313 = scalar_select %p312, %s21, 1
      %p314 = scmp.lt.s32.totalorder %s22, 0
      %s315 = scalar_select %p314, %s22, 0
      %s316 = sadd.s32 %s315, %s313
      %s317 = smul.addr %s316, 8
      %s318 = scalar_lea.vmem %s4, %s317
      %p319 = scmp.lt.s32.totalorder %s21, 1
      %s320 = scalar_select %p319, %s21, 1
      %p321 = scmp.lt.s32.totalorder %s22, 0
      %s322 = scalar_select %p321, %s22, 0
      %s323 = sadd.s32 %s322, %s320
      %s324 = smul.addr %s323, 8
      %s325 = scalar_lea.vmem %s5, %s324
      %v326 = vld [vmem:[%s304] sm:$0xf]
      %vm327 = vcmask 11264
      %328 = vst.msk [vmem:[#allocation2] sm:$0xf] %vm327, %v326
      %v329 = vld [vmem:[%s297] sm:$0xf]
      %331 = vrot.lane.b32.xlu0 %v329, 2
      %v332 = vpop.permute.xlu0 %331
      %vm334 = vcmask 142352
      %335 = vst.msk [vmem:[#allocation2] sm:$0xf] %vm334, %v332
      %v336 = vld [vmem:[%s311] sm:$0xf]
      %338 = vrot.lane.b32.xlu0 %v336, 18
      %v339 = vpop.permute.xlu0 %338
      %vm341 = vcmask 158864
      %342 = vst.msk [vmem:[#allocation2] sm:$0xf] %vm341, %v339
      %v343 = vld [vmem:[%s3] sm:$0xff]
      %v344 = vld [vmem:[#allocation2] sm:$0xf]
      %s345 = scalar_lea.vmem %s3, 8
      %v346 = vld [vmem:[%s345] sm:$0xff]
      %348 = vrot.lane.b32.xlu0 %v344, 126
      %v349 = vpop.permute.xlu0 %348
      %vm350 = vcmask 31744
      %v352 = vsel %vm350, %v346, 0
      %vm354 = vcmask 1043456
      %v355 = vsel %vm354, %v349, 0
      %357 = vmatprep.subr.mxu0 0.0
      %358 = vmatpush1.msra.mxu0 0.0
      %359 = vmatprep.subr.mxu0 0.0
      %360 = vmatpush1.msra.mxu0 0.0
      %361 = vmatprep.subr.mxu0 0.0
      %362 = vmatpush1.msra.mxu0 0.0
      %363 = vmatprep.subr.mxu0 0.0
      %364 = vmatpush1.msra.mxu0 0.0
      %365 = vmatprep.subr.mxu0 0.0
      %366 = vmatpush1.msra.mxu0 0.0
      %367 = vmatprep.subr.mxu0 0.0
      %368 = vmatpush1.msra.mxu0 0.0
      %369 = vmatprep.subr.mxu0 0.0
      %370 = vmatpush1.msra.mxu0 0.0
      %371 = vmatprep.subr.mxu0 0.0
      %372 = vmatpush1.msra.mxu0 0.0
      %373 = vmatprep.subr.mxu0 0.0
      %374 = vmatpush1.msra.mxu0 0.0
      %375 = vmatprep.subr.mxu0 0.0
      %376 = vmatpush1.msra.mxu0 0.0
      %377 = vmatprep.subr.mxu0 0.0
      %378 = vmatpush1.msra.mxu0 0.0
      %379 = vmatprep.subr.mxu0 0.0
      %380 = vmatpush1.msra.mxu0 0.0
      %381 = vmatprep.subr.mxu0 0.0
      %382 = vmatpush1.msra.mxu0 0.0
      %383 = vmatprep.subr.mxu0 0.0
      %384 = vmatpush1.msra.mxu0 0.0
      %385 = vmatprep.subr.mxu0 0.0
      %386 = vmatpush1.msra.mxu0 0.0
      %387 = vmatprep.subr.mxu0 0.0
      %388 = vmatpush1.msra.mxu0 %v355
      %389 = vmatprep.subr.mxu0 0.0
      %390 = vmatpush2.msra.mxu0 0.0
      %391 = vmatprep.subr.mxu0 0.0
      %392 = vmatpush2.msra.mxu0 0.0
      %393 = vmatprep.subr.mxu0 0.0
      %394 = vmatpush2.msra.mxu0 0.0
      %395 = vmatprep.subr.mxu0 0.0
      %396 = vmatpush2.msra.mxu0 0.0
      %397 = vmatprep.subr.mxu0 0.0
      %398 = vmatpush2.msra.mxu0 0.0
      %399 = vmatprep.subr.mxu0 0.0
      %400 = vmatpush2.msra.mxu0 0.0
      %401 = vmatprep.subr.mxu0 0.0
      %402 = vmatpush2.msra.mxu0 0.0
      %403 = vmatprep.subr.mxu0 0.0
      %404 = vmatpush2.msra.mxu0 0.0
      %405 = vmatprep.subr.mxu0 0.0
      %406 = vmatpush2.msra.mxu0 0.0
      %407 = vmatprep.subr.mxu0 0.0
      %408 = vmatpush2.msra.mxu0 0.0
      %409 = vmatprep.subr.mxu0 0.0
      %410 = vmatpush2.msra.mxu0 0.0
      %411 = vmatprep.subr.mxu0 0.0
      %412 = vmatpush2.msra.mxu0 0.0
      %413 = vmatprep.subr.mxu0 0.0
      %414 = vmatpush2.msra.mxu0 0.0
      %415 = vmatprep.subr.mxu0 0.0
      %416 = vmatpush2.msra.mxu0 0.0
      %417 = vmatprep.subr.mxu0 0.0
      %418 = vmatpush2.msra.mxu0 0.0
      %419 = vmatprep.subr.mxu0 0.0
      %420 = vmatpush2.msra.mxu0 0.0
      %421 = vmatprep.mubr.f32.mxu0 0.0
      %422 = vmatmul.mubr.f32.gmra.mxu0 %v352
      %v423 = vpop.f32.mrf.mxu0
      %v424 = vadd.f32 0.0, %v423
      %v425 = vpop.f32.mrf.mxu0
      %426 = vdwg.mxu0
      %427 = vrot.lane.b32.xlu0 %v344, 125
      %v428 = vpop.permute.xlu0 %427
      %v430 = vsel %vm350, %v343, 0
      %v432 = vsel %vm354, %v428, 0
      %434 = vmatprep.subr.mxu0 0.0
      %435 = vmatpush1.msra.mxu0 0.0
      %436 = vmatprep.subr.mxu0 0.0
      %437 = vmatpush1.msra.mxu0 0.0
      %438 = vmatprep.subr.mxu0 0.0
      %439 = vmatpush1.msra.mxu0 0.0
      %440 = vmatprep.subr.mxu0 0.0
      %441 = vmatpush1.msra.mxu0 0.0
      %442 = vmatprep.subr.mxu0 0.0
      %443 = vmatpush1.msra.mxu0 0.0
      %444 = vmatprep.subr.mxu0 0.0
      %445 = vmatpush1.msra.mxu0 0.0
      %446 = vmatprep.subr.mxu0 0.0
      %447 = vmatpush1.msra.mxu0 0.0
      %448 = vmatprep.subr.mxu0 0.0
      %449 = vmatpush1.msra.mxu0 0.0
      %450 = vmatprep.subr.mxu0 0.0
      %451 = vmatpush1.msra.mxu0 0.0
      %452 = vmatprep.subr.mxu0 0.0
      %453 = vmatpush1.msra.mxu0 0.0
      %454 = vmatprep.subr.mxu0 0.0
      %455 = vmatpush1.msra.mxu0 0.0
      %456 = vmatprep.subr.mxu0 0.0
      %457 = vmatpush1.msra.mxu0 0.0
      %458 = vmatprep.subr.mxu0 0.0
      %459 = vmatpush1.msra.mxu0 0.0
      %460 = vmatprep.subr.mxu0 0.0
      %461 = vmatpush1.msra.mxu0 0.0
      %462 = vmatprep.subr.mxu0 0.0
      %463 = vmatpush1.msra.mxu0 0.0
      %464 = vmatprep.subr.mxu0 0.0
      %465 = vmatpush1.msra.mxu0 %v432
      %466 = vmatprep.subr.mxu0 0.0
      %467 = vmatpush2.msra.mxu0 0.0
      %468 = vmatprep.subr.mxu0 0.0
      %469 = vmatpush2.msra.mxu0 0.0
      %470 = vmatprep.subr.mxu0 0.0
      %471 = vmatpush2.msra.mxu0 0.0
      %472 = vmatprep.subr.mxu0 0.0
      %473 = vmatpush2.msra.mxu0 0.0
      %474 = vmatprep.subr.mxu0 0.0
      %475 = vmatpush2.msra.mxu0 0.0
      %476 = vmatprep.subr.mxu0 0.0
      %477 = vmatpush2.msra.mxu0 0.0
      %478 = vmatprep.subr.mxu0 0.0
      %479 = vmatpush2.msra.mxu0 0.0
      %480 = vmatprep.subr.mxu0 0.0
      %481 = vmatpush2.msra.mxu0 0.0
      %482 = vmatprep.subr.mxu0 0.0
      %483 = vmatpush2.msra.mxu0 0.0
      %484 = vmatprep.subr.mxu0 0.0
      %485 = vmatpush2.msra.mxu0 0.0
      %486 = vmatprep.subr.mxu0 0.0
      %487 = vmatpush2.msra.mxu0 0.0
      %488 = vmatprep.subr.mxu0 0.0
      %489 = vmatpush2.msra.mxu0 0.0
      %490 = vmatprep.subr.mxu0 0.0
      %491 = vmatpush2.msra.mxu0 0.0
      %492 = vmatprep.subr.mxu0 0.0
      %493 = vmatpush2.msra.mxu0 0.0
      %494 = vmatprep.subr.mxu0 0.0
      %495 = vmatpush2.msra.mxu0 0.0
      %496 = vmatprep.subr.mxu0 0.0
      %497 = vmatpush2.msra.mxu0 0.0
      %498 = vmatprep.mubr.f32.mxu0 0.0
      %499 = vmatmul.mubr.f32.gmra.mxu0 %v430
      %v500 = vpop.f32.mrf.mxu0
      %v501 = vadd.f32 %v424, %v500
      %v502 = vpop.f32.mrf.mxu0
      %503 = vdwg.mxu0
      %s504 = scalar_lea.vmem %s3, 16
      %v505 = vld [vmem:[%s504] sm:$0xff]
      %506 = vrot.lane.b32.xlu0 %v344, 127
      %v507 = vpop.permute.xlu0 %506
      %v509 = vsel %vm350, %v505, 0
      %v511 = vsel %vm354, %v507, 0
      %513 = vmatprep.subr.mxu0 0.0
      %514 = vmatpush1.msra.mxu0 0.0
      %515 = vmatprep.subr.mxu0 0.0
      %516 = vmatpush1.msra.mxu0 0.0
      %517 = vmatprep.subr.mxu0 0.0
      %518 = vmatpush1.msra.mxu0 0.0
      %519 = vmatprep.subr.mxu0 0.0
      %520 = vmatpush1.msra.mxu0 0.0
      %521 = vmatprep.subr.mxu0 0.0
      %522 = vmatpush1.msra.mxu0 0.0
      %523 = vmatprep.subr.mxu0 0.0
      %524 = vmatpush1.msra.mxu0 0.0
      %525 = vmatprep.subr.mxu0 0.0
      %526 = vmatpush1.msra.mxu0 0.0
      %527 = vmatprep.subr.mxu0 0.0
      %528 = vmatpush1.msra.mxu0 0.0
      %529 = vmatprep.subr.mxu0 0.0
      %530 = vmatpush1.msra.mxu0 0.0
      %531 = vmatprep.subr.mxu0 0.0
      %532 = vmatpush1.msra.mxu0 0.0
      %533 = vmatprep.subr.mxu0 0.0
      %534 = vmatpush1.msra.mxu0 0.0
      %535 = vmatprep.subr.mxu0 0.0
      %536 = vmatpush1.msra.mxu0 0.0
      %537 = vmatprep.subr.mxu0 0.0
      %538 = vmatpush1.msra.mxu0 0.0
      %539 = vmatprep.subr.mxu0 0.0
      %540 = vmatpush1.msra.mxu0 0.0
      %541 = vmatprep.subr.mxu0 0.0
      %542 = vmatpush1.msra.mxu0 0.0
      %543 = vmatprep.subr.mxu0 0.0
      %544 = vmatpush1.msra.mxu0 %v511
      %545 = vmatprep.subr.mxu0 0.0
      %546 = vmatpush2.msra.mxu0 0.0
      %547 = vmatprep.subr.mxu0 0.0
      %548 = vmatpush2.msra.mxu0 0.0
      %549 = vmatprep.subr.mxu0 0.0
      %550 = vmatpush2.msra.mxu0 0.0
      %551 = vmatprep.subr.mxu0 0.0
      %552 = vmatpush2.msra.mxu0 0.0
      %553 = vmatprep.subr.mxu0 0.0
      %554 = vmatpush2.msra.mxu0 0.0
      %555 = vmatprep.subr.mxu0 0.0
      %556 = vmatpush2.msra.mxu0 0.0
      %557 = vmatprep.subr.mxu0 0.0
      %558 = vmatpush2.msra.mxu0 0.0
      %559 = vmatprep.subr.mxu0 0.0
      %560 = vmatpush2.msra.mxu0 0.0
      %561 = vmatprep.subr.mxu0 0.0
      %562 = vmatpush2.msra.mxu0 0.0
      %563 = vmatprep.subr.mxu0 0.0
      %564 = vmatpush2.msra.mxu0 0.0
      %565 = vmatprep.subr.mxu0 0.0
      %566 = vmatpush2.msra.mxu0 0.0
      %567 = vmatprep.subr.mxu0 0.0
      %568 = vmatpush2.msra.mxu0 0.0
      %569 = vmatprep.subr.mxu0 0.0
      %570 = vmatpush2.msra.mxu0 0.0
      %571 = vmatprep.subr.mxu0 0.0
      %572 = vmatpush2.msra.mxu0 0.0
      %573 = vmatprep.subr.mxu0 0.0
      %574 = vmatpush2.msra.mxu0 0.0
      %575 = vmatprep.subr.mxu0 0.0
      %576 = vmatpush2.msra.mxu0 0.0
      %577 = vmatprep.mubr.f32.mxu0 0.0
      %578 = vmatmul.mubr.f32.gmra.mxu0 %v509
      %v579 = vpop.f32.mrf.mxu0
      %v580 = vadd.f32 0.0, %v579
      %v581 = vpop.f32.mrf.mxu0
      %582 = vdwg.mxu0
      %v583 = vadd.f32 %v501, %v580
      %vm584 = vcmask 130048
      %v585 = vsel %vm584, %v583, 0.0
      %586 = vadd.xlane.f32.xlu0 %v585
      %v587 = vpop.xlane.xlu0 %586
      %vm588 = vcmask 7168
      %589 = vst.msk [vmem:[%s318] sm:$0xff] %vm588, %v587
      %v590 = vmul.f32 %v583, %v583
      %v591 = vsel %vm584, %v590, 0.0
      %592 = vadd.xlane.f32.xlu0 %v591
      %v593 = vpop.xlane.xlu0 %592
      %594 = vst.msk [vmem:[%s325] sm:$0xff] %vm588, %v593
      %p595 = scmp.lt.s32.totalorder %s21, 1
      %s596 = scalar_select %p595, %s21, 1
      %p597 = scmp.lt.s32.totalorder %s22, 0
      %s598 = scalar_select %p597, %s22, 0
      %s599 = sadd.s32 %s598, %s596
      %s600 = smul.addr %s599, 8
      %s601 = scalar_lea.vmem %s4, %s600
      %p602 = scmp.lt.s32.totalorder %s21, 1
      %s603 = scalar_select %p602, %s21, 1
      %p604 = scmp.lt.s32.totalorder %s22, 0
      %s605 = scalar_select %p604, %s22, 0
      %s606 = sadd.s32 %s605, %s603
      %s607 = smul.addr %s606, 8
      %s608 = scalar_lea.vmem %s5, %s607
      // Predicated region
      $region37: #{trans_conv1d_act_norm.2} parent=35 // pred_check
        %p609 = pneg %p154
      $region38: #{trans_conv1d_act_norm.2} parent=35 // pred_check_branch
        %611 = sbr.rel (%p609) target = $region40
      $region39: #{trans_conv1d_act_norm.2} parent=35 // pred_region
        _
      $region40: #{trans_conv1d_act_norm.2} parent=35 // pred_fallthru
        _
      // Predicated region
      $region41: #{trans_conv1d_act_norm.2} parent=35 // pred_check
        %p612 = pneg %p182
      $region42: #{trans_conv1d_act_norm.2} parent=35 // pred_check_branch
        %614 = sbr.rel (%p612) target = $region44
      $region43: #{trans_conv1d_act_norm.2} parent=35 // pred_region
        _
      $region44: #{trans_conv1d_act_norm.2} parent=35 // pred_fallthru
        _
    $region36: #{trans_conv1d_act_norm.2} parent=5 // pred_fallthru
      _
    %p615 = scmp.le.s32.totalorder 2, %s12
    // Predicated region
    $region45: #{trans_conv1d_act_norm.2} parent=5 // pred_check
      %p616 = pneg %p615
    $region46: #{trans_conv1d_act_norm.2} parent=5 // pred_check_branch
      %618 = sbr.rel (%p616) target = $region48
    $region47: #{trans_conv1d_act_norm.2} parent=5 // pred_region
      %s619 = ssub.s32 %s12, 2
      // Predicated region
      $region49: #{trans_conv1d_act_norm.2} parent=47 // pred_check
        %p620 = pneg %p160
      $region50: #{trans_conv1d_act_norm.2} parent=47 // pred_check_branch
        %622 = sbr.rel (%p620) target = $region52
      $region51: #{trans_conv1d_act_norm.2} parent=47 // pred_region
        %p623 = scmp.lt.s32.totalorder %s23, 1
        %s624 = scalar_select %p623, %s23, 1
        %p625 = scmp.lt.s32.totalorder %s24, 0
        %s626 = scalar_select %p625, %s24, 0
        %s627 = sadd.s32 %s626, %s624
        %s628 = smul.addr %s627, 8
        %s629 = scalar_lea.vmem %s4, %s628
      $region52: #{trans_conv1d_act_norm.2} parent=47 // pred_fallthru
        _
      // Predicated region
      $region53: #{trans_conv1d_act_norm.2} parent=47 // pred_check
        %p630 = pneg %p188
      $region54: #{trans_conv1d_act_norm.2} parent=47 // pred_check_branch
        %632 = sbr.rel (%p630) target = $region56
      $region55: #{trans_conv1d_act_norm.2} parent=47 // pred_region
        %p633 = scmp.lt.s32.totalorder %s23, 1
        %s634 = scalar_select %p633, %s23, 1
        %p635 = scmp.lt.s32.totalorder %s24, 0
        %s636 = scalar_select %p635, %s24, 0
        %s637 = sadd.s32 %s636, %s634
        %s638 = smul.addr %s637, 8
        %s639 = scalar_lea.vmem %s5, %s638
      $region56: #{trans_conv1d_act_norm.2} parent=47 // pred_fallthru
        _
    $region48: #{trans_conv1d_act_norm.2} parent=5 // pred_fallthru
      _
  $region6: #{trans_conv1d_act_norm.2} parent=0 // loop_footer
    %s16 = sadd.s32 1, %s12
  $region7: #{trans_conv1d_act_norm.2} parent=0 // loop_footer_branch
    %11 = sbr.rel target = $region3
  $region8: #{trans_conv1d_act_norm.2} parent=0 // loop_exit
    _

</llo_original>
